<compile_context>
chip_gen: v7x
topology: tpu7x:2x2x1
jax: 0.10.0
libtpu: 0.0.40
codegen_flags: <defaults>
</compile_context>

<pallas_src>
import functools

import jax
import jax.numpy as jnp
from jax.experimental import pallas as pl
from jax.experimental.pallas import tpu as pltpu


def _round_up(n, m):
    return ((n + m - 1) // m) * m


# ----------------------------------------------------------------------------
# Tiled matmul + bias kernel (input projection and fused final Linear layers)
# ----------------------------------------------------------------------------

def _matmul_bias_kernel(x_ref, w_ref, b_ref, o_ref):
    o_ref[...] = (jnp.dot(x_ref[...], w_ref[...],
                          preferred_element_type=jnp.float32)
                  + b_ref[...]).astype(o_ref.dtype)


def matmul_bias(x2, w, b, out_dtype=None):
    """(M, K) @ (K, N) + (N,) via a tiled Pallas matmul.

    M is padded to a sublane multiple, N to a lane-dense multiple of 128.
    K stays whole (it is input_size / hidden_size here and fits VMEM).
    """
    M, K = x2.shape
    N = w.shape[1]
    out_dtype = out_dtype or x2.dtype
    TM, TN = 256, 256
    Mp = _round_up(M, 8) if M <= TM else _round_up(M, TM)
    tm = Mp if Mp <= TM else TM
    Np = _round_up(N, 128) if N <= TN else _round_up(N, TN)
    tn = Np if Np <= TN else TN

    xp = jnp.pad(x2, ((0, Mp - M), (0, 0))) if Mp != M else x2
    wp = jnp.pad(w, ((0, 0), (0, Np - N))) if Np != N else w
    bp = (jnp.pad(b, (0, Np - N)) if Np != N else b).reshape(1, Np)

    out = pl.pallas_call(
        _matmul_bias_kernel,
        out_shape=jax.ShapeDtypeStruct((Mp, Np), out_dtype),
        grid_spec=pltpu.PrefetchScalarGridSpec(
            num_scalar_prefetch=0,
            grid=(Mp // tm, Np // tn),
            in_specs=[
                pl.BlockSpec((tm, K), lambda i, j: (i, 0)),
                pl.BlockSpec((K, tn), lambda i, j: (0, j)),
                pl.BlockSpec((1, tn), lambda i, j: (0, j)),
            ],
            out_specs=pl.BlockSpec((tm, tn), lambda i, j: (i, j)),
        ),
        compiler_params=pltpu.CompilerParams(
            dimension_semantics=("parallel", "parallel")),
    )(xp, wp, bp)
    return out[:M, :N]


# ----------------------------------------------------------------------------
# Fused complex-LSTM recurrence kernel (chunked over time)
# ----------------------------------------------------------------------------

def _lstm_chunk_kernel(gin_ref, wbd_ref, o_ref, h_st, c_st):
    """Tc time steps of the fully fused (real + imag weight-set) recurrence.

    gin_ref : (Tc, 2B, 8H)  precomputed x @ W_in + b_in, gate-interleaved
                            column order [i_r,i_i,f_r,f_i,g_r,g_i,o_r,o_i]
    wbd_ref : (2H, 8H)      block-diagonal, gate-interleaved W_hh for both sets
    o_ref   : (Tc, 2B, 2H)  hidden sequence, cols [0:H] = real-weight stream,
                            cols [H:2H] = imag-weight stream
    h_st/c_st : (2B, 2H)    recurrent state, persistent across grid steps
    """
    @pl.when(pl.program_id(0) == 0)
    def _():
        h_st[...] = jnp.zeros_like(h_st)
        c_st[...] = jnp.zeros_like(c_st)

    H = h_st.shape[1] // 2
    Tc = gin_ref.shape[0]

    def step(t, carry):
        # One MXU matmul per time step covers both weight sets.
        g = gin_ref[t] + jnp.dot(h_st[...], wbd_ref[...],
                                 preferred_element_type=jnp.float32)
        s = jax.nn.sigmoid(g)                       # i, f, o gates (and unused g cols)
        gg = jnp.tanh(g[:, 4 * H:6 * H])            # cell candidate gates
        i_g = s[:, 0:2 * H]
        f_g = s[:, 2 * H:4 * H]
        o_g = s[:, 6 * H:8 * H]
        c_new = f_g * c_st[...] + i_g * gg
        h_new = o_g * jnp.tanh(c_new)
        c_st[...] = c_new
        h_st[...] = h_new
        o_ref[t] = h_new.astype(o_ref.dtype)
        return carry

    unroll = True if Tc <= 8 else (8 if Tc % 8 == 0 else False)
    jax.lax.fori_loop(0, Tc, step, 0, unroll=unroll)


def complex_lstm_layer(x_tbf, layer, *, time_chunk=64):
    """One fused complex LSTM layer on time-major, batch-stacked input.

    x_tbf: (T, 2B, F) with rows [0:B] = real stream, rows [B:2B] = imag stream.
    Returns the complex-combined output, same stacking: (T, 2B, H).
    """
    T, B2, F = x_tbf.shape
    B = B2 // 2
    H = layer["w_bd"].shape[0] // 2

    # (1) Input projection for all T steps in one parallel MXU matmul
    #     (real + imag weight sets fused along the 8H output axis).
    gin = matmul_bias(x_tbf.reshape(T * B2, F), layer["w_in"], layer["b_in"],
                      out_dtype=jnp.float32).reshape(T, B2, 8 * H)

    # (2) Sequential recurrence over chunks of Tc time steps.
    Tc = min(time_chunk, T)
    Tp = _round_up(T, Tc)
    if Tp != T:
        gin = jnp.pad(gin, ((0, Tp - T), (0, 0), (0, 0)))

    out = pl.pallas_call(
        _lstm_chunk_kernel,
        out_shape=jax.ShapeDtypeStruct((Tp, B2, 2 * H), jnp.float32),
        grid_spec=pltpu.PrefetchScalarGridSpec(
            num_scalar_prefetch=0,
            grid=(Tp // Tc,),
            in_specs=[
                pl.BlockSpec((Tc, B2, 8 * H), lambda c: (c, 0, 0)),
                pl.BlockSpec((2 * H, 8 * H), lambda c: (0, 0)),
            ],
            out_specs=pl.BlockSpec((Tc, B2, 2 * H), lambda c: (c, 0, 0)),
            scratch_shapes=[pltpu.VMEM((B2, 2 * H), jnp.float32),
                            pltpu.VMEM((B2, 2 * H), jnp.float32)],
        ),
        # The time-chunk axis carries the recurrence: it MUST stay
        # "arbitrary" (sequential); "parallel" would silently break the carry.
        compiler_params=pltpu.CompilerParams(
            dimension_semantics=("arbitrary",)),
    )(gin, layer["w_bd"])

    out_r = out[:T, :, :H]    # real-weight LSTM outputs
    out_i = out[:T, :, H:]    # imag-weight LSTM outputs

    # Complex combination: real' = rr - ii, imag' = ri + ir (re-stacked).
    real = out_r[:, :B] - out_i[:, B:]
    imag = out_r[:, B:] + out_i[:, :B]
    return jnp.concatenate([real, imag], axis=1)


# ----------------------------------------------------------------------------
# Parameter preprocessing + full forward
# ----------------------------------------------------------------------------

def _interleave_gates(a_r, a_i, H, axis):
    """Interleave per-gate blocks: [i_r,i_i,f_r,f_i,g_r,g_i,o_r,o_i]."""
    parts = []
    for g in range(4):
        sl = [slice(None)] * a_r.ndim
        sl[axis] = slice(g * H, (g + 1) * H)
        sl = tuple(sl)
        parts.append(a_r[sl])
        parts.append(a_i[sl])
    return jnp.concatenate(parts, axis=axis)


def prepare_params(params):
    """One-time conversion of PyTorch-layout weights into kernel layout."""
    layers = []
    for layer in params["layers"]:
        w_ih_r, w_hh_r, b_ih_r, b_hh_r = layer["real"]
        w_ih_i, w_hh_i, b_ih_i, b_hh_i = layer["imag"]
        H = w_hh_r.shape[1]
        # Fused input projection: (in, 8H) weights / (8H,) bias,
        # gate-interleaved real/imag columns.
        w_in = _interleave_gates(w_ih_r.T, w_ih_i.T, H, axis=1)
        b_in = _interleave_gates(b_ih_r + b_hh_r, b_ih_i + b_hh_i, H, axis=0)
        # Block-diagonal recurrent weight (2H, 8H): top rows feed the
        # real-weight stream, bottom rows the imag-weight stream.
        zeros = jnp.zeros((H, 4 * H), w_hh_r.dtype)
        whh_r_bd = jnp.concatenate([w_hh_r.T, zeros], axis=0)   # (2H, 4H)
        whh_i_bd = jnp.concatenate([zeros, w_hh_i.T], axis=0)   # (2H, 4H)
        w_bd = _interleave_gates(whh_r_bd, whh_i_bd, H, axis=1)  # (2H, 8H)
        layers.append({"w_in": w_in, "b_in": b_in, "w_bd": w_bd})
    return {
        "layers": layers,
        # Fused final Linear: (H, 2O) weights / (2O,) bias.
        "lin_w": jnp.concatenate([params["linear_r_w"].T,
                                  params["linear_i_w"].T], axis=1),
        "lin_b": jnp.concatenate([params["linear_r_b"],
                                  params["linear_i_b"]]),
    }


@functools.partial(jax.jit, static_argnames=("time_chunk",))
def lstm_block_forward(x, prepared, *, time_chunk=64):
    """LSTMBlock.forward: x (B, T, 2*input_size) -> (B, T, 2*input_size)."""
    B, T, F2 = x.shape
    I = F2 // 2
    real, imag = x[..., :I], x[..., I:]

    # Stack real/imag streams along batch and go time-major: (T, 2B, I).
    h = jnp.transpose(jnp.concatenate([real, imag], axis=0), (1, 0, 2))
    for layer in prepared["layers"]:
        h = complex_lstm_layer(h, layer, time_chunk=time_chunk)

    Hsz = h.shape[-1]
    O = prepared["lin_b"].shape[0] // 2
    # Single fused matmul for both Linear layers (lane-dense output).
    out = matmul_bias(h.reshape(T * 2 * B, Hsz),
                      prepared["lin_w"], prepared["lin_b"])
    out = out.reshape(T, 2 * B, 2 * O)
    out_r = jnp.transpose(out[:, :B, :O], (1, 0, 2))   # linear_r(real)
    out_i = jnp.transpose(out[:, B:, O:], (1, 0, 2))   # linear_i(imag)
    return jnp.concatenate([out_r, out_i], axis=-1)


# ----------------------------------------------------------------------------
# Deterministic parameter init + pure-JAX reference
# ----------------------------------------------------------------------------

def init_params(key, input_size, hidden_size, num_layers):
    def nrm(k, shape, scale=0.1):
        return (scale * jax.random.normal(k, shape)).astype(jnp.float32)

    layers = []
    for l in range(num_layers):
        in_l = input_size if l == 0 else hidden_size
        parts = {}
        for part in ("real", "imag"):
            key, k1, k2, k3, k4 = jax.random.split(key, 5)
            parts[part] = (nrm(k1, (4 * hidden_size, in_l)),
                           nrm(k2, (4 * hidden_size, hidden_size)),
                           nrm(k3, (4 * hidden_size,)),
                           nrm(k4, (4 * hidden_size,)))
        layers.append(parts)
    key, k1, k2, k3, k4 = jax.random.split(key, 5)
    return {
        "layers": layers,
        "linear_r_w": nrm(k1, (input_size, hidden_size)),
        "linear_r_b": nrm(k2, (input_size,)),
        "linear_i_w": nrm(k3, (input_size, hidden_size)),
        "linear_i_b": nrm(k4, (input_size,)),
    }


def _ref_lstm(x, w_ih, w_hh, b_ih, b_hh):
    B, T, _ = x.shape
    H = w_ih.shape[0] // 4

    def step(carry, x_t):
        h, c = carry
        g = x_t @ w_ih.T + h @ w_hh.T + b_ih + b_hh
        i = jax.nn.sigmoid(g[:, 0 * H:1 * H])
        f = jax.nn.sigmoid(g[:, 1 * H:2 * H])
        gg = jnp.tanh(g[:, 2 * H:3 * H])
        o = jax.nn.sigmoid(g[:, 3 * H:4 * H])
        c = f * c + i * gg
        h = o * jnp.tanh(c)
        return (h, c), h

    h0 = jnp.zeros((B, H), jnp.float32)
    _, hs = jax.lax.scan(step, (h0, h0), jnp.transpose(x, (1, 0, 2)))
    return jnp.transpose(hs, (1, 0, 2))


def _ref_block(x, params):
    real, imag = jnp.split(x, 2, axis=-1)
    for layer in params["layers"]:
        rr = _ref_lstm(real, *layer["real"])
        ri = _ref_lstm(imag, *layer["real"])
        ir = _ref_lstm(real, *layer["imag"])
        ii = _ref_lstm(imag, *layer["imag"])
        real, imag = rr - ii, ri + ir
    real = real @ params["linear_r_w"].T + params["linear_r_b"]
    imag = imag @ params["linear_i_w"].T + params["linear_i_b"]
    return jnp.concatenate([real, imag], axis=-1)


# ----------------------------------------------------------------------------

if __name__ == "__main__":
    input_size, hidden_size, num_layers = 16, 32, 2
    B, T = 2, 8

    key = jax.random.PRNGKey(0)
    key, kx, kp = jax.random.split(key, 3)
    x = jax.random.normal(kx, (B, T, 2 * input_size), dtype=jnp.float32)
    params = init_params(kp, input_size, hidden_size, num_layers)
    prepared = prepare_params(params)

    out = jax.block_until_ready(lstm_block_forward(x, prepared))
    assert out.shape == (B, T, 2 * input_size), out.shape

    ref = jax.block_until_ready(_ref_block(x, params))
    assert jnp.allclose(out, ref, atol=1e-3, rtol=1e-3), (
        float(jnp.max(jnp.abs(out - ref))))

    print("KERNEL_OK")
</pallas_src>

<mosaic_0001>
module attributes {stable_mosaic.version = 11 : i64} {
  func.func @_matmul_bias_kernel(%arg0: i32, %arg1: i32, %arg2: memref<32x16xf32, #tpu.memory_space<vmem>>, %arg3: memref<16x256xf32, #tpu.memory_space<vmem>>, %arg4: memref<1x256xf32, #tpu.memory_space<vmem>>, %arg5: memref<32x256xf32, #tpu.memory_space<vmem>>) attributes {dimension_semantics = [#tpu.dimension_semantics<parallel>, #tpu.dimension_semantics<parallel>], iteration_bounds = array<i64: 1, 1>, scalar_prefetch = 0 : i64, scratch_operands = 0 : i64, tpu.core_type = #tpu.core_type<tc>, window_params = [{transform_indices = @transform_0, window_bounds = array<i64: 32, 16>}, {transform_indices = @transform_1, window_bounds = array<i64: 16, 256>}, {transform_indices = @transform_2, window_bounds = array<i64: 1, 256>}, {transform_indices = @transform_3, window_bounds = array<i64: 32, 256>}]} {
    %c0 = arith.constant 0 : index
    %c0_0 = arith.constant 0 : index
    %0 = vector.load %arg2[%c0, %c0_0] : memref<32x16xf32, #tpu.memory_space<vmem>>, vector<32x16xf32>
    %c0_1 = arith.constant 0 : index
    %c0_2 = arith.constant 0 : index
    %1 = vector.load %arg3[%c0_1, %c0_2] : memref<16x256xf32, #tpu.memory_space<vmem>>, vector<16x256xf32>
    %cst = arith.constant dense<0.000000e+00> : vector<32x256xf32>
    %2 = tpu.matmul %0, %1, %cst {dimension_numbers = #tpu.dot_dimension_numbers<[1], [0], [0], [1], [0, 0, 1, 1], [], []>} : vector<32x16xf32>, vector<16x256xf32>, vector<32x256xf32> -> vector<32x256xf32>
    %c0_3 = arith.constant 0 : index
    %c0_4 = arith.constant 0 : index
    %3 = vector.load %arg4[%c0_3, %c0_4] : memref<1x256xf32, #tpu.memory_space<vmem>>, vector<1x256xf32>
    %4 = vector.broadcast %3 : vector<1x256xf32> to vector<32x256xf32>
    %5 = arith.addf %2, %4 : vector<32x256xf32>
    %c0_5 = arith.constant 0 : index
    %c0_6 = arith.constant 0 : index
    %6 = vector.load %arg5[%c0_5, %c0_6] : memref<32x256xf32, #tpu.memory_space<vmem>>, vector<32x256xf32>
    tpu.vector_store %arg5[%c0_5, %c0_6], %5 {strides = array<i32>} : memref<32x256xf32, #tpu.memory_space<vmem>>, vector<32x256xf32>,
    return
  }
  func.func @transform_0(%arg0: i32, %arg1: i32) -> (i32, i32) {
    %c0_i32 = arith.constant 0 : i32
    %c0_i32_0 = arith.constant 0 : i32
    return %arg0, %c0_i32 : i32, i32
  }
  func.func @transform_1(%arg0: i32, %arg1: i32) -> (i32, i32) {
    %c0_i32 = arith.constant 0 : i32
    %c0_i32_0 = arith.constant 0 : i32
    return %c0_i32, %arg1 : i32, i32
  }
  func.func @transform_2(%arg0: i32, %arg1: i32) -> (i32, i32) {
    %c0_i32 = arith.constant 0 : i32
    %c0_i32_0 = arith.constant 0 : i32
    return %c0_i32, %arg1 : i32, i32
  }
  func.func @transform_3(%arg0: i32, %arg1: i32) -> (i32, i32) {
    %c0_i32 = arith.constant 0 : i32
    return %arg0, %arg1 : i32, i32
  }
}

module attributes {stable_mosaic.version = 11 : i64} {
  func.func @_lstm_chunk_kernel(%arg0: i32, %arg1: memref<8x4x256xf32, #tpu.memory_space<vmem>>, %arg2: memref<64x256xf32, #tpu.memory_space<vmem>>, %arg3: memref<8x4x64xf32, #tpu.memory_space<vmem>>, %arg4: memref<4x64xf32, #tpu.memory_space<vmem>>, %arg5: memref<4x64xf32, #tpu.memory_space<vmem>>) attributes {dimension_semantics = [#tpu.dimension_semantics<arbitrary>], iteration_bounds = array<i64: 1>, scalar_prefetch = 0 : i64, scratch_operands = 2 : i64, tpu.core_type = #tpu.core_type<tc>, window_params = [{transform_indices = @transform_0, window_bounds = array<i64: 8, 4, 256>}, {pipeline_mode = #tpu.pipeline_mode<synchronous>, transform_indices = @transform_1, window_bounds = array<i64: 64, 256>}, {transform_indices = @transform_2, window_bounds = array<i64: 8, 4, 64>}]} {
    %c0_i32 = arith.constant 0 : i32
    %0 = arith.cmpi eq, %arg0, %c0_i32 : i32
    %1 = arith.extui %0 : i1 to i32
    %c0_i32_0 = arith.constant 0 : i32
    %2 = arith.cmpi ne, %1, %c0_i32_0 : i32
    scf.if %2 {
      %cst_128 = arith.constant 0.000000e+00 : f32
      %235 = vector.broadcast %cst_128 : f32 to vector<4x64xf32>
      %c0_129 = arith.constant 0 : index
      %c0_130 = arith.constant 0 : index
      %236 = vector.load %arg4[%c0_129, %c0_130] : memref<4x64xf32, #tpu.memory_space<vmem>>, vector<4x64xf32>
      tpu.vector_store %arg4[%c0_129, %c0_130], %235 {strides = array<i32>} : memref<4x64xf32, #tpu.memory_space<vmem>>, vector<4x64xf32>,
      %cst_131 = arith.constant 0.000000e+00 : f32
      %237 = vector.broadcast %cst_131 : f32 to vector<4x64xf32>
      %c0_132 = arith.constant 0 : index
      %c0_133 = arith.constant 0 : index
      %238 = vector.load %arg5[%c0_132, %c0_133] : memref<4x64xf32, #tpu.memory_space<vmem>>, vector<4x64xf32>
      tpu.vector_store %arg5[%c0_132, %c0_133], %237 {strides = array<i32>} : memref<4x64xf32, #tpu.memory_space<vmem>>, vector<4x64xf32>,
    } else {
    }
    %c0_i32_1 = arith.constant 0 : i32
    %3 = arith.index_cast %c0_i32_1 : i32 to index
    %c0 = arith.constant 0 : index
    %c0_2 = arith.constant 0 : index
    %4 = vector.load %arg1[%3, %c0, %c0_2] : memref<8x4x256xf32, #tpu.memory_space<vmem>>, vector<1x4x256xf32>
    %5 = vector.shape_cast %4 : vector<1x4x256xf32> to vector<4x256xf32>
    %c0_3 = arith.constant 0 : index
    %c0_4 = arith.constant 0 : index
    %6 = vector.load %arg4[%c0_3, %c0_4] : memref<4x64xf32, #tpu.memory_space<vmem>>, vector<4x64xf32>
    %c0_5 = arith.constant 0 : index
    %c0_6 = arith.constant 0 : index
    %7 = vector.load %arg2[%c0_5, %c0_6] : memref<64x256xf32, #tpu.memory_space<vmem>>, vector<64x256xf32>
    %cst = arith.constant dense<0.000000e+00> : vector<4x256xf32>
    %8 = tpu.matmul %6, %7, %cst {dimension_numbers = #tpu.dot_dimension_numbers<[1], [0], [0], [1], [0, 0, 1, 1], [], []>} : vector<4x64xf32>, vector<64x256xf32>, vector<4x256xf32> -> vector<4x256xf32>
    %9 = arith.addf %5, %8 : vector<4x256xf32>
    %10 = arith.negf %9 : vector<4x256xf32>
    %11 = math.exp %10 : vector<4x256xf32>
    %cst_7 = arith.constant 1.000000e+00 : f32
    %12 = vector.broadcast %cst_7 : f32 to vector<4x256xf32>
    %13 = arith.addf %12, %11 : vector<4x256xf32>
    %14 = arith.divf %12, %13 : vector<4x256xf32>
    %15 = vector.extract_strided_slice %9 {offsets = [0, 128], sizes = [4, 64], strides = [1, 1]} : vector<4x256xf32> to vector<4x64xf32>
    %16 = math.tanh %15 : vector<4x64xf32>
    %17 = vector.extract_strided_slice %14 {offsets = [0, 0], sizes = [4, 64], strides = [1, 1]} : vector<4x256xf32> to vector<4x64xf32>
    %18 = vector.extract_strided_slice %14 {offsets = [0, 64], sizes = [4, 64], strides = [1, 1]} : vector<4x256xf32> to vector<4x64xf32>
    %19 = vector.extract_strided_slice %14 {offsets = [0, 192], sizes = [4, 64], strides = [1, 1]} : vector<4x256xf32> to vector<4x64xf32>
    %c0_8 = arith.constant 0 : index
    %c0_9 = arith.constant 0 : index
    %20 = vector.load %arg5[%c0_8, %c0_9] : memref<4x64xf32, #tpu.memory_space<vmem>>, vector<4x64xf32>
    %21 = arith.mulf %18, %20 : vector<4x64xf32>
    %22 = arith.mulf %17, %16 : vector<4x64xf32>
    %23 = arith.addf %21, %22 : vector<4x64xf32>
    %24 = math.tanh %23 : vector<4x64xf32>
    %25 = arith.mulf %19, %24 : vector<4x64xf32>
    %c0_10 = arith.constant 0 : index
    %c0_11 = arith.constant 0 : index
    %26 = vector.load %arg5[%c0_10, %c0_11] : memref<4x64xf32, #tpu.memory_space<vmem>>, vector<4x64xf32>
    tpu.vector_store %arg5[%c0_10, %c0_11], %23 {strides = array<i32>} : memref<4x64xf32, #tpu.memory_space<vmem>>, vector<4x64xf32>,
    %c0_12 = arith.constant 0 : index
    %c0_13 = arith.constant 0 : index
    %27 = vector.load %arg4[%c0_12, %c0_13] : memref<4x64xf32, #tpu.memory_space<vmem>>, vector<4x64xf32>
    tpu.vector_store %arg4[%c0_12, %c0_13], %25 {strides = array<i32>} : memref<4x64xf32, #tpu.memory_space<vmem>>, vector<4x64xf32>,
    %28 = arith.index_cast %c0_i32_1 : i32 to index
    %c0_14 = arith.constant 0 : index
    %c0_15 = arith.constant 0 : index
    %29 = vector.load %arg3[%28, %c0_14, %c0_15] : memref<8x4x64xf32, #tpu.memory_space<vmem>>, vector<1x4x64xf32>
    %30 = vector.shape_cast %29 : vector<1x4x64xf32> to vector<4x64xf32>
    %31 = vector.shape_cast %25 : vector<4x64xf32> to vector<1x4x64xf32>
    tpu.vector_store %arg3[%28, %c0_14, %c0_15], %31 {strides = array<i32>} : memref<8x4x64xf32, #tpu.memory_space<vmem>>, vector<1x4x64xf32>,
    %c1_i32 = arith.constant 1 : i32
    %32 = arith.index_cast %c1_i32 : i32 to index
    %c0_16 = arith.constant 0 : index
    %c0_17 = arith.constant 0 : index
    %33 = vector.load %arg1[%32, %c0_16, %c0_17] : memref<8x4x256xf32, #tpu.memory_space<vmem>>, vector<1x4x256xf32>
    %34 = vector.shape_cast %33 : vector<1x4x256xf32> to vector<4x256xf32>
    %c0_18 = arith.constant 0 : index
    %c0_19 = arith.constant 0 : index
    %35 = vector.load %arg4[%c0_18, %c0_19] : memref<4x64xf32, #tpu.memory_space<vmem>>, vector<4x64xf32>
    %c0_20 = arith.constant 0 : index
    %c0_21 = arith.constant 0 : index
    %36 = vector.load %arg2[%c0_20, %c0_21] : memref<64x256xf32, #tpu.memory_space<vmem>>, vector<64x256xf32>
    %cst_22 = arith.constant dense<0.000000e+00> : vector<4x256xf32>
    %37 = tpu.matmul %35, %36, %cst_22 {dimension_numbers = #tpu.dot_dimension_numbers<[1], [0], [0], [1], [0, 0, 1, 1], [], []>} : vector<4x64xf32>, vector<64x256xf32>, vector<4x256xf32> -> vector<4x256xf32>
    %38 = arith.addf %34, %37 : vector<4x256xf32>
    %39 = arith.negf %38 : vector<4x256xf32>
    %40 = math.exp %39 : vector<4x256xf32>
    %cst_23 = arith.constant 1.000000e+00 : f32
    %41 = vector.broadcast %cst_23 : f32 to vector<4x256xf32>
    %42 = arith.addf %41, %40 : vector<4x256xf32>
    %43 = arith.divf %41, %42 : vector<4x256xf32>
    %44 = vector.extract_strided_slice %38 {offsets = [0, 128], sizes = [4, 64], strides = [1, 1]} : vector<4x256xf32> to vector<4x64xf32>
    %45 = math.tanh %44 : vector<4x64xf32>
    %46 = vector.extract_strided_slice %43 {offsets = [0, 0], sizes = [4, 64], strides = [1, 1]} : vector<4x256xf32> to vector<4x64xf32>
    %47 = vector.extract_strided_slice %43 {offsets = [0, 64], sizes = [4, 64], strides = [1, 1]} : vector<4x256xf32> to vector<4x64xf32>
    %48 = vector.extract_strided_slice %43 {offsets = [0, 192], sizes = [4, 64], strides = [1, 1]} : vector<4x256xf32> to vector<4x64xf32>
    %c0_24 = arith.constant 0 : index
    %c0_25 = arith.constant 0 : index
    %49 = vector.load %arg5[%c0_24, %c0_25] : memref<4x64xf32, #tpu.memory_space<vmem>>, vector<4x64xf32>
    %50 = arith.mulf %47, %49 : vector<4x64xf32>
    %51 = arith.mulf %46, %45 : vector<4x64xf32>
    %52 = arith.addf %50, %51 : vector<4x64xf32>
    %53 = math.tanh %52 : vector<4x64xf32>
    %54 = arith.mulf %48, %53 : vector<4x64xf32>
    %c0_26 = arith.constant 0 : index
    %c0_27 = arith.constant 0 : index
    %55 = vector.load %arg5[%c0_26, %c0_27] : memref<4x64xf32, #tpu.memory_space<vmem>>, vector<4x64xf32>
    tpu.vector_store %arg5[%c0_26, %c0_27], %52 {strides = array<i32>} : memref<4x64xf32, #tpu.memory_space<vmem>>, vector<4x64xf32>,
    %c0_28 = arith.constant 0 : index
    %c0_29 = arith.constant 0 : index
    %56 = vector.load %arg4[%c0_28, %c0_29] : memref<4x64xf32, #tpu.memory_space<vmem>>, vector<4x64xf32>
    tpu.vector_store %arg4[%c0_28, %c0_29], %54 {strides = array<i32>} : memref<4x64xf32, #tpu.memory_space<vmem>>, vector<4x64xf32>,
    %57 = arith.index_cast %c1_i32 : i32 to index
    %c0_30 = arith.constant 0 : index
    %c0_31 = arith.constant 0 : index
    %58 = vector.load %arg3[%57, %c0_30, %c0_31] : memref<8x4x64xf32, #tpu.memory_space<vmem>>, vector<1x4x64xf32>
    %59 = vector.shape_cast %58 : vector<1x4x64xf32> to vector<4x64xf32>
    %60 = vector.shape_cast %54 : vector<4x64xf32> to vector<1x4x64xf32>
    tpu.vector_store %arg3[%57, %c0_30, %c0_31], %60 {strides = array<i32>} : memref<8x4x64xf32, #tpu.memory_space<vmem>>, vector<1x4x64xf32>,
    %c2_i32 = arith.constant 2 : i32
    %61 = arith.index_cast %c2_i32 : i32 to index
    %c0_32 = arith.constant 0 : index
    %c0_33 = arith.constant 0 : index
    %62 = vector.load %arg1[%61, %c0_32, %c0_33] : memref<8x4x256xf32, #tpu.memory_space<vmem>>, vector<1x4x256xf32>
    %63 = vector.shape_cast %62 : vector<1x4x256xf32> to vector<4x256xf32>
    %c0_34 = arith.constant 0 : index
    %c0_35 = arith.constant 0 : index
    %64 = vector.load %arg4[%c0_34, %c0_35] : memref<4x64xf32, #tpu.memory_space<vmem>>, vector<4x64xf32>
    %c0_36 = arith.constant 0 : index
    %c0_37 = arith.constant 0 : index
    %65 = vector.load %arg2[%c0_36, %c0_37] : memref<64x256xf32, #tpu.memory_space<vmem>>, vector<64x256xf32>
    %cst_38 = arith.constant dense<0.000000e+00> : vector<4x256xf32>
    %66 = tpu.matmul %64, %65, %cst_38 {dimension_numbers = #tpu.dot_dimension_numbers<[1], [0], [0], [1], [0, 0, 1, 1], [], []>} : vector<4x64xf32>, vector<64x256xf32>, vector<4x256xf32> -> vector<4x256xf32>
    %67 = arith.addf %63, %66 : vector<4x256xf32>
    %68 = arith.negf %67 : vector<4x256xf32>
    %69 = math.exp %68 : vector<4x256xf32>
    %cst_39 = arith.constant 1.000000e+00 : f32
    %70 = vector.broadcast %cst_39 : f32 to vector<4x256xf32>
    %71 = arith.addf %70, %69 : vector<4x256xf32>
    %72 = arith.divf %70, %71 : vector<4x256xf32>
    %73 = vector.extract_strided_slice %67 {offsets = [0, 128], sizes = [4, 64], strides = [1, 1]} : vector<4x256xf32> to vector<4x64xf32>
    %74 = math.tanh %73 : vector<4x64xf32>
    %75 = vector.extract_strided_slice %72 {offsets = [0, 0], sizes = [4, 64], strides = [1, 1]} : vector<4x256xf32> to vector<4x64xf32>
    %76 = vector.extract_strided_slice %72 {offsets = [0, 64], sizes = [4, 64], strides = [1, 1]} : vector<4x256xf32> to vector<4x64xf32>
    %77 = vector.extract_strided_slice %72 {offsets = [0, 192], sizes = [4, 64], strides = [1, 1]} : vector<4x256xf32> to vector<4x64xf32>
    %c0_40 = arith.constant 0 : index
    %c0_41 = arith.constant 0 : index
    %78 = vector.load %arg5[%c0_40, %c0_41] : memref<4x64xf32, #tpu.memory_space<vmem>>, vector<4x64xf32>
    %79 = arith.mulf %76, %78 : vector<4x64xf32>
    %80 = arith.mulf %75, %74 : vector<4x64xf32>
    %81 = arith.addf %79, %80 : vector<4x64xf32>
    %82 = math.tanh %81 : vector<4x64xf32>
    %83 = arith.mulf %77, %82 : vector<4x64xf32>
    %c0_42 = arith.constant 0 : index
    %c0_43 = arith.constant 0 : index
    %84 = vector.load %arg5[%c0_42, %c0_43] : memref<4x64xf32, #tpu.memory_space<vmem>>, vector<4x64xf32>
    tpu.vector_store %arg5[%c0_42, %c0_43], %81 {strides = array<i32>} : memref<4x64xf32, #tpu.memory_space<vmem>>, vector<4x64xf32>,
    %c0_44 = arith.constant 0 : index
    %c0_45 = arith.constant 0 : index
    %85 = vector.load %arg4[%c0_44, %c0_45] : memref<4x64xf32, #tpu.memory_space<vmem>>, vector<4x64xf32>
    tpu.vector_store %arg4[%c0_44, %c0_45], %83 {strides = array<i32>} : memref<4x64xf32, #tpu.memory_space<vmem>>, vector<4x64xf32>,
    %86 = arith.index_cast %c2_i32 : i32 to index
    %c0_46 = arith.constant 0 : index
    %c0_47 = arith.constant 0 : index
    %87 = vector.load %arg3[%86, %c0_46, %c0_47] : memref<8x4x64xf32, #tpu.memory_space<vmem>>, vector<1x4x64xf32>
    %88 = vector.shape_cast %87 : vector<1x4x64xf32> to vector<4x64xf32>
    %89 = vector.shape_cast %83 : vector<4x64xf32> to vector<1x4x64xf32>
    tpu.vector_store %arg3[%86, %c0_46, %c0_47], %89 {strides = array<i32>} : memref<8x4x64xf32, #tpu.memory_space<vmem>>, vector<1x4x64xf32>,
    %c3_i32 = arith.constant 3 : i32
    %90 = arith.index_cast %c3_i32 : i32 to index
    %c0_48 = arith.constant 0 : index
    %c0_49 = arith.constant 0 : index
    %91 = vector.load %arg1[%90, %c0_48, %c0_49] : memref<8x4x256xf32, #tpu.memory_space<vmem>>, vector<1x4x256xf32>
    %92 = vector.shape_cast %91 : vector<1x4x256xf32> to vector<4x256xf32>
    %c0_50 = arith.constant 0 : index
    %c0_51 = arith.constant 0 : index
    %93 = vector.load %arg4[%c0_50, %c0_51] : memref<4x64xf32, #tpu.memory_space<vmem>>, vector<4x64xf32>
    %c0_52 = arith.constant 0 : index
    %c0_53 = arith.constant 0 : index
    %94 = vector.load %arg2[%c0_52, %c0_53] : memref<64x256xf32, #tpu.memory_space<vmem>>, vector<64x256xf32>
    %cst_54 = arith.constant dense<0.000000e+00> : vector<4x256xf32>
    %95 = tpu.matmul %93, %94, %cst_54 {dimension_numbers = #tpu.dot_dimension_numbers<[1], [0], [0], [1], [0, 0, 1, 1], [], []>} : vector<4x64xf32>, vector<64x256xf32>, vector<4x256xf32> -> vector<4x256xf32>
    %96 = arith.addf %92, %95 : vector<4x256xf32>
    %97 = arith.negf %96 : vector<4x256xf32>
    %98 = math.exp %97 : vector<4x256xf32>
    %cst_55 = arith.constant 1.000000e+00 : f32
    %99 = vector.broadcast %cst_55 : f32 to vector<4x256xf32>
    %100 = arith.addf %99, %98 : vector<4x256xf32>
    %101 = arith.divf %99, %100 : vector<4x256xf32>
    %102 = vector.extract_strided_slice %96 {offsets = [0, 128], sizes = [4, 64], strides = [1, 1]} : vector<4x256xf32> to vector<4x64xf32>
    %103 = math.tanh %102 : vector<4x64xf32>
    %104 = vector.extract_strided_slice %101 {offsets = [0, 0], sizes = [4, 64], strides = [1, 1]} : vector<4x256xf32> to vector<4x64xf32>
    %105 = vector.extract_strided_slice %101 {offsets = [0, 64], sizes = [4, 64], strides = [1, 1]} : vector<4x256xf32> to vector<4x64xf32>
    %106 = vector.extract_strided_slice %101 {offsets = [0, 192], sizes = [4, 64], strides = [1, 1]} : vector<4x256xf32> to vector<4x64xf32>
    %c0_56 = arith.constant 0 : index
    %c0_57 = arith.constant 0 : index
    %107 = vector.load %arg5[%c0_56, %c0_57] : memref<4x64xf32, #tpu.memory_space<vmem>>, vector<4x64xf32>
    %108 = arith.mulf %105, %107 : vector<4x64xf32>
    %109 = arith.mulf %104, %103 : vector<4x64xf32>
    %110 = arith.addf %108, %109 : vector<4x64xf32>
    %111 = math.tanh %110 : vector<4x64xf32>
    %112 = arith.mulf %106, %111 : vector<4x64xf32>
    %c0_58 = arith.constant 0 : index
    %c0_59 = arith.constant 0 : index
    %113 = vector.load %arg5[%c0_58, %c0_59] : memref<4x64xf32, #tpu.memory_space<vmem>>, vector<4x64xf32>
    tpu.vector_store %arg5[%c0_58, %c0_59], %110 {strides = array<i32>} : memref<4x64xf32, #tpu.memory_space<vmem>>, vector<4x64xf32>,
    %c0_60 = arith.constant 0 : index
    %c0_61 = arith.constant 0 : index
    %114 = vector.load %arg4[%c0_60, %c0_61] : memref<4x64xf32, #tpu.memory_space<vmem>>, vector<4x64xf32>
    tpu.vector_store %arg4[%c0_60, %c0_61], %112 {strides = array<i32>} : memref<4x64xf32, #tpu.memory_space<vmem>>, vector<4x64xf32>,
    %115 = arith.index_cast %c3_i32 : i32 to index
    %c0_62 = arith.constant 0 : index
    %c0_63 = arith.constant 0 : index
    %116 = vector.load %arg3[%115, %c0_62, %c0_63] : memref<8x4x64xf32, #tpu.memory_space<vmem>>, vector<1x4x64xf32>
    %117 = vector.shape_cast %116 : vector<1x4x64xf32> to vector<4x64xf32>
    %118 = vector.shape_cast %112 : vector<4x64xf32> to vector<1x4x64xf32>
    tpu.vector_store %arg3[%115, %c0_62, %c0_63], %118 {strides = array<i32>} : memref<8x4x64xf32, #tpu.memory_space<vmem>>, vector<1x4x64xf32>,
    %c4_i32 = arith.constant 4 : i32
    %119 = arith.index_cast %c4_i32 : i32 to index
    %c0_64 = arith.constant 0 : index
    %c0_65 = arith.constant 0 : index
    %120 = vector.load %arg1[%119, %c0_64, %c0_65] : memref<8x4x256xf32, #tpu.memory_space<vmem>>, vector<1x4x256xf32>
    %121 = vector.shape_cast %120 : vector<1x4x256xf32> to vector<4x256xf32>
    %c0_66 = arith.constant 0 : index
    %c0_67 = arith.constant 0 : index
    %122 = vector.load %arg4[%c0_66, %c0_67] : memref<4x64xf32, #tpu.memory_space<vmem>>, vector<4x64xf32>
    %c0_68 = arith.constant 0 : index
    %c0_69 = arith.constant 0 : index
    %123 = vector.load %arg2[%c0_68, %c0_69] : memref<64x256xf32, #tpu.memory_space<vmem>>, vector<64x256xf32>
    %cst_70 = arith.constant dense<0.000000e+00> : vector<4x256xf32>
    %124 = tpu.matmul %122, %123, %cst_70 {dimension_numbers = #tpu.dot_dimension_numbers<[1], [0], [0], [1], [0, 0, 1, 1], [], []>} : vector<4x64xf32>, vector<64x256xf32>, vector<4x256xf32> -> vector<4x256xf32>
    %125 = arith.addf %121, %124 : vector<4x256xf32>
    %126 = arith.negf %125 : vector<4x256xf32>
    %127 = math.exp %126 : vector<4x256xf32>
    %cst_71 = arith.constant 1.000000e+00 : f32
    %128 = vector.broadcast %cst_71 : f32 to vector<4x256xf32>
    %129 = arith.addf %128, %127 : vector<4x256xf32>
    %130 = arith.divf %128, %129 : vector<4x256xf32>
    %131 = vector.extract_strided_slice %125 {offsets = [0, 128], sizes = [4, 64], strides = [1, 1]} : vector<4x256xf32> to vector<4x64xf32>
    %132 = math.tanh %131 : vector<4x64xf32>
    %133 = vector.extract_strided_slice %130 {offsets = [0, 0], sizes = [4, 64], strides = [1, 1]} : vector<4x256xf32> to vector<4x64xf32>
    %134 = vector.extract_strided_slice %130 {offsets = [0, 64], sizes = [4, 64], strides = [1, 1]} : vector<4x256xf32> to vector<4x64xf32>
    %135 = vector.extract_strided_slice %130 {offsets = [0, 192], sizes = [4, 64], strides = [1, 1]} : vector<4x256xf32> to vector<4x64xf32>
    %c0_72 = arith.constant 0 : index
    %c0_73 = arith.constant 0 : index
    %136 = vector.load %arg5[%c0_72, %c0_73] : memref<4x64xf32, #tpu.memory_space<vmem>>, vector<4x64xf32>
    %137 = arith.mulf %134, %136 : vector<4x64xf32>
    %138 = arith.mulf %133, %132 : vector<4x64xf32>
    %139 = arith.addf %137, %138 : vector<4x64xf32>
    %140 = math.tanh %139 : vector<4x64xf32>
    %141 = arith.mulf %135, %140 : vector<4x64xf32>
    %c0_74 = arith.constant 0 : index
    %c0_75 = arith.constant 0 : index
    %142 = vector.load %arg5[%c0_74, %c0_75] : memref<4x64xf32, #tpu.memory_space<vmem>>, vector<4x64xf32>
    tpu.vector_store %arg5[%c0_74, %c0_75], %139 {strides = array<i32>} : memref<4x64xf32, #tpu.memory_space<vmem>>, vector<4x64xf32>,
    %c0_76 = arith.constant 0 : index
    %c0_77 = arith.constant 0 : index
    %143 = vector.load %arg4[%c0_76, %c0_77] : memref<4x64xf32, #tpu.memory_space<vmem>>, vector<4x64xf32>
    tpu.vector_store %arg4[%c0_76, %c0_77], %141 {strides = array<i32>} : memref<4x64xf32, #tpu.memory_space<vmem>>, vector<4x64xf32>,
    %144 = arith.index_cast %c4_i32 : i32 to index
    %c0_78 = arith.constant 0 : index
    %c0_79 = arith.constant 0 : index
    %145 = vector.load %arg3[%144, %c0_78, %c0_79] : memref<8x4x64xf32, #tpu.memory_space<vmem>>, vector<1x4x64xf32>
    %146 = vector.shape_cast %145 : vector<1x4x64xf32> to vector<4x64xf32>
    %147 = vector.shape_cast %141 : vector<4x64xf32> to vector<1x4x64xf32>
    tpu.vector_store %arg3[%144, %c0_78, %c0_79], %147 {strides = array<i32>} : memref<8x4x64xf32, #tpu.memory_space<vmem>>, vector<1x4x64xf32>,
    %c5_i32 = arith.constant 5 : i32
    %148 = arith.index_cast %c5_i32 : i32 to index
    %c0_80 = arith.constant 0 : index
    %c0_81 = arith.constant 0 : index
    %149 = vector.load %arg1[%148, %c0_80, %c0_81] : memref<8x4x256xf32, #tpu.memory_space<vmem>>, vector<1x4x256xf32>
    %150 = vector.shape_cast %149 : vector<1x4x256xf32> to vector<4x256xf32>
    %c0_82 = arith.constant 0 : index
    %c0_83 = arith.constant 0 : index
    %151 = vector.load %arg4[%c0_82, %c0_83] : memref<4x64xf32, #tpu.memory_space<vmem>>, vector<4x64xf32>
    %c0_84 = arith.constant 0 : index
    %c0_85 = arith.constant 0 : index
    %152 = vector.load %arg2[%c0_84, %c0_85] : memref<64x256xf32, #tpu.memory_space<vmem>>, vector<64x256xf32>
    %cst_86 = arith.constant dense<0.000000e+00> : vector<4x256xf32>
    %153 = tpu.matmul %151, %152, %cst_86 {dimension_numbers = #tpu.dot_dimension_numbers<[1], [0], [0], [1], [0, 0, 1, 1], [], []>} : vector<4x64xf32>, vector<64x256xf32>, vector<4x256xf32> -> vector<4x256xf32>
    %154 = arith.addf %150, %153 : vector<4x256xf32>
    %155 = arith.negf %154 : vector<4x256xf32>
    %156 = math.exp %155 : vector<4x256xf32>
    %cst_87 = arith.constant 1.000000e+00 : f32
    %157 = vector.broadcast %cst_87 : f32 to vector<4x256xf32>
    %158 = arith.addf %157, %156 : vector<4x256xf32>
    %159 = arith.divf %157, %158 : vector<4x256xf32>
    %160 = vector.extract_strided_slice %154 {offsets = [0, 128], sizes = [4, 64], strides = [1, 1]} : vector<4x256xf32> to vector<4x64xf32>
    %161 = math.tanh %160 : vector<4x64xf32>
    %162 = vector.extract_strided_slice %159 {offsets = [0, 0], sizes = [4, 64], strides = [1, 1]} : vector<4x256xf32> to vector<4x64xf32>
    %163 = vector.extract_strided_slice %159 {offsets = [0, 64], sizes = [4, 64], strides = [1, 1]} : vector<4x256xf32> to vector<4x64xf32>
    %164 = vector.extract_strided_slice %159 {offsets = [0, 192], sizes = [4, 64], strides = [1, 1]} : vector<4x256xf32> to vector<4x64xf32>
    %c0_88 = arith.constant 0 : index
    %c0_89 = arith.constant 0 : index
    %165 = vector.load %arg5[%c0_88, %c0_89] : memref<4x64xf32, #tpu.memory_space<vmem>>, vector<4x64xf32>
    %166 = arith.mulf %163, %165 : vector<4x64xf32>
    %167 = arith.mulf %162, %161 : vector<4x64xf32>
    %168 = arith.addf %166, %167 : vector<4x64xf32>
    %169 = math.tanh %168 : vector<4x64xf32>
    %170 = arith.mulf %164, %169 : vector<4x64xf32>
    %c0_90 = arith.constant 0 : index
    %c0_91 = arith.constant 0 : index
    %171 = vector.load %arg5[%c0_90, %c0_91] : memref<4x64xf32, #tpu.memory_space<vmem>>, vector<4x64xf32>
    tpu.vector_store %arg5[%c0_90, %c0_91], %168 {strides = array<i32>} : memref<4x64xf32, #tpu.memory_space<vmem>>, vector<4x64xf32>,
    %c0_92 = arith.constant 0 : index
    %c0_93 = arith.constant 0 : index
    %172 = vector.load %arg4[%c0_92, %c0_93] : memref<4x64xf32, #tpu.memory_space<vmem>>, vector<4x64xf32>
    tpu.vector_store %arg4[%c0_92, %c0_93], %170 {strides = array<i32>} : memref<4x64xf32, #tpu.memory_space<vmem>>, vector<4x64xf32>,
    %173 = arith.index_cast %c5_i32 : i32 to index
    %c0_94 = arith.constant 0 : index
    %c0_95 = arith.constant 0 : index
    %174 = vector.load %arg3[%173, %c0_94, %c0_95] : memref<8x4x64xf32, #tpu.memory_space<vmem>>, vector<1x4x64xf32>
    %175 = vector.shape_cast %174 : vector<1x4x64xf32> to vector<4x64xf32>
    %176 = vector.shape_cast %170 : vector<4x64xf32> to vector<1x4x64xf32>
    tpu.vector_store %arg3[%173, %c0_94, %c0_95], %176 {strides = array<i32>} : memref<8x4x64xf32, #tpu.memory_space<vmem>>, vector<1x4x64xf32>,
    %c6_i32 = arith.constant 6 : i32
    %177 = arith.index_cast %c6_i32 : i32 to index
    %c0_96 = arith.constant 0 : index
    %c0_97 = arith.constant 0 : index
    %178 = vector.load %arg1[%177, %c0_96, %c0_97] : memref<8x4x256xf32, #tpu.memory_space<vmem>>, vector<1x4x256xf32>
    %179 = vector.shape_cast %178 : vector<1x4x256xf32> to vector<4x256xf32>
    %c0_98 = arith.constant 0 : index
    %c0_99 = arith.constant 0 : index
    %180 = vector.load %arg4[%c0_98, %c0_99] : memref<4x64xf32, #tpu.memory_space<vmem>>, vector<4x64xf32>
    %c0_100 = arith.constant 0 : index
    %c0_101 = arith.constant 0 : index
    %181 = vector.load %arg2[%c0_100, %c0_101] : memref<64x256xf32, #tpu.memory_space<vmem>>, vector<64x256xf32>
    %cst_102 = arith.constant dense<0.000000e+00> : vector<4x256xf32>
    %182 = tpu.matmul %180, %181, %cst_102 {dimension_numbers = #tpu.dot_dimension_numbers<[1], [0], [0], [1], [0, 0, 1, 1], [], []>} : vector<4x64xf32>, vector<64x256xf32>, vector<4x256xf32> -> vector<4x256xf32>
    %183 = arith.addf %179, %182 : vector<4x256xf32>
    %184 = arith.negf %183 : vector<4x256xf32>
    %185 = math.exp %184 : vector<4x256xf32>
    %cst_103 = arith.constant 1.000000e+00 : f32
    %186 = vector.broadcast %cst_103 : f32 to vector<4x256xf32>
    %187 = arith.addf %186, %185 : vector<4x256xf32>
    %188 = arith.divf %186, %187 : vector<4x256xf32>
    %189 = vector.extract_strided_slice %183 {offsets = [0, 128], sizes = [4, 64], strides = [1, 1]} : vector<4x256xf32> to vector<4x64xf32>
    %190 = math.tanh %189 : vector<4x64xf32>
    %191 = vector.extract_strided_slice %188 {offsets = [0, 0], sizes = [4, 64], strides = [1, 1]} : vector<4x256xf32> to vector<4x64xf32>
    %192 = vector.extract_strided_slice %188 {offsets = [0, 64], sizes = [4, 64], strides = [1, 1]} : vector<4x256xf32> to vector<4x64xf32>
    %193 = vector.extract_strided_slice %188 {offsets = [0, 192], sizes = [4, 64], strides = [1, 1]} : vector<4x256xf32> to vector<4x64xf32>
    %c0_104 = arith.constant 0 : index
    %c0_105 = arith.constant 0 : index
    %194 = vector.load %arg5[%c0_104, %c0_105] : memref<4x64xf32, #tpu.memory_space<vmem>>, vector<4x64xf32>
    %195 = arith.mulf %192, %194 : vector<4x64xf32>
    %196 = arith.mulf %191, %190 : vector<4x64xf32>
    %197 = arith.addf %195, %196 : vector<4x64xf32>
    %198 = math.tanh %197 : vector<4x64xf32>
    %199 = arith.mulf %193, %198 : vector<4x64xf32>
    %c0_106 = arith.constant 0 : index
    %c0_107 = arith.constant 0 : index
    %200 = vector.load %arg5[%c0_106, %c0_107] : memref<4x64xf32, #tpu.memory_space<vmem>>, vector<4x64xf32>
    tpu.vector_store %arg5[%c0_106, %c0_107], %197 {strides = array<i32>} : memref<4x64xf32, #tpu.memory_space<vmem>>, vector<4x64xf32>,
    %c0_108 = arith.constant 0 : index
    %c0_109 = arith.constant 0 : index
    %201 = vector.load %arg4[%c0_108, %c0_109] : memref<4x64xf32, #tpu.memory_space<vmem>>, vector<4x64xf32>
    tpu.vector_store %arg4[%c0_108, %c0_109], %199 {strides = array<i32>} : memref<4x64xf32, #tpu.memory_space<vmem>>, vector<4x64xf32>,
    %202 = arith.index_cast %c6_i32 : i32 to index
    %c0_110 = arith.constant 0 : index
    %c0_111 = arith.constant 0 : index
    %203 = vector.load %arg3[%202, %c0_110, %c0_111] : memref<8x4x64xf32, #tpu.memory_space<vmem>>, vector<1x4x64xf32>
    %204 = vector.shape_cast %203 : vector<1x4x64xf32> to vector<4x64xf32>
    %205 = vector.shape_cast %199 : vector<4x64xf32> to vector<1x4x64xf32>
    tpu.vector_store %arg3[%202, %c0_110, %c0_111], %205 {strides = array<i32>} : memref<8x4x64xf32, #tpu.memory_space<vmem>>, vector<1x4x64xf32>,
    %c7_i32 = arith.constant 7 : i32
    %206 = arith.index_cast %c7_i32 : i32 to index
    %c0_112 = arith.constant 0 : index
    %c0_113 = arith.constant 0 : index
    %207 = vector.load %arg1[%206, %c0_112, %c0_113] : memref<8x4x256xf32, #tpu.memory_space<vmem>>, vector<1x4x256xf32>
    %208 = vector.shape_cast %207 : vector<1x4x256xf32> to vector<4x256xf32>
    %c0_114 = arith.constant 0 : index
    %c0_115 = arith.constant 0 : index
    %209 = vector.load %arg4[%c0_114, %c0_115] : memref<4x64xf32, #tpu.memory_space<vmem>>, vector<4x64xf32>
    %c0_116 = arith.constant 0 : index
    %c0_117 = arith.constant 0 : index
    %210 = vector.load %arg2[%c0_116, %c0_117] : memref<64x256xf32, #tpu.memory_space<vmem>>, vector<64x256xf32>
    %cst_118 = arith.constant dense<0.000000e+00> : vector<4x256xf32>
    %211 = tpu.matmul %209, %210, %cst_118 {dimension_numbers = #tpu.dot_dimension_numbers<[1], [0], [0], [1], [0, 0, 1, 1], [], []>} : vector<4x64xf32>, vector<64x256xf32>, vector<4x256xf32> -> vector<4x256xf32>
    %212 = arith.addf %208, %211 : vector<4x256xf32>
    %213 = arith.negf %212 : vector<4x256xf32>
    %214 = math.exp %213 : vector<4x256xf32>
    %cst_119 = arith.constant 1.000000e+00 : f32
    %215 = vector.broadcast %cst_119 : f32 to vector<4x256xf32>
    %216 = arith.addf %215, %214 : vector<4x256xf32>
    %217 = arith.divf %215, %216 : vector<4x256xf32>
    %218 = vector.extract_strided_slice %212 {offsets = [0, 128], sizes = [4, 64], strides = [1, 1]} : vector<4x256xf32> to vector<4x64xf32>
    %219 = math.tanh %218 : vector<4x64xf32>
    %220 = vector.extract_strided_slice %217 {offsets = [0, 0], sizes = [4, 64], strides = [1, 1]} : vector<4x256xf32> to vector<4x64xf32>
    %221 = vector.extract_strided_slice %217 {offsets = [0, 64], sizes = [4, 64], strides = [1, 1]} : vector<4x256xf32> to vector<4x64xf32>
    %222 = vector.extract_strided_slice %217 {offsets = [0, 192], sizes = [4, 64], strides = [1, 1]} : vector<4x256xf32> to vector<4x64xf32>
    %c0_120 = arith.constant 0 : index
    %c0_121 = arith.constant 0 : index
    %223 = vector.load %arg5[%c0_120, %c0_121] : memref<4x64xf32, #tpu.memory_space<vmem>>, vector<4x64xf32>
    %224 = arith.mulf %221, %223 : vector<4x64xf32>
    %225 = arith.mulf %220, %219 : vector<4x64xf32>
    %226 = arith.addf %224, %225 : vector<4x64xf32>
    %227 = math.tanh %226 : vector<4x64xf32>
    %228 = arith.mulf %222, %227 : vector<4x64xf32>
    %c0_122 = arith.constant 0 : index
    %c0_123 = arith.constant 0 : index
    %229 = vector.load %arg5[%c0_122, %c0_123] : memref<4x64xf32, #tpu.memory_space<vmem>>, vector<4x64xf32>
    tpu.vector_store %arg5[%c0_122, %c0_123], %226 {strides = array<i32>} : memref<4x64xf32, #tpu.memory_space<vmem>>, vector<4x64xf32>,
    %c0_124 = arith.constant 0 : index
    %c0_125 = arith.constant 0 : index
    %230 = vector.load %arg4[%c0_124, %c0_125] : memref<4x64xf32, #tpu.memory_space<vmem>>, vector<4x64xf32>
    tpu.vector_store %arg4[%c0_124, %c0_125], %228 {strides = array<i32>} : memref<4x64xf32, #tpu.memory_space<vmem>>, vector<4x64xf32>,
    %231 = arith.index_cast %c7_i32 : i32 to index
    %c0_126 = arith.constant 0 : index
    %c0_127 = arith.constant 0 : index
    %232 = vector.load %arg3[%231, %c0_126, %c0_127] : memref<8x4x64xf32, #tpu.memory_space<vmem>>, vector<1x4x64xf32>
    %233 = vector.shape_cast %232 : vector<1x4x64xf32> to vector<4x64xf32>
    %234 = vector.shape_cast %228 : vector<4x64xf32> to vector<1x4x64xf32>
    tpu.vector_store %arg3[%231, %c0_126, %c0_127], %234 {strides = array<i32>} : memref<8x4x64xf32, #tpu.memory_space<vmem>>, vector<1x4x64xf32>,
    %c8_i32 = arith.constant 8 : i32
    return
  }
  func.func @transform_0(%arg0: i32) -> (i32, i32, i32) {
    %c0_i32 = arith.constant 0 : i32
    %c0_i32_0 = arith.constant 0 : i32
    %c0_i32_1 = arith.constant 0 : i32
    return %arg0, %c0_i32, %c0_i32_0 : i32, i32, i32
  }
  func.func @transform_1(%arg0: i32) -> (i32, i32) {
    %c0_i32 = arith.constant 0 : i32
    %c0_i32_0 = arith.constant 0 : i32
    %c0_i32_1 = arith.constant 0 : i32
    return %c0_i32, %c0_i32_0 : i32, i32
  }
  func.func @transform_2(%arg0: i32) -> (i32, i32, i32) {
    %c0_i32 = arith.constant 0 : i32
    %c0_i32_0 = arith.constant 0 : i32
    %c0_i32_1 = arith.constant 0 : i32
    return %arg0, %c0_i32, %c0_i32_0 : i32, i32, i32
  }
}

module attributes {stable_mosaic.version = 11 : i64} {
  func.func @_matmul_bias_kernel(%arg0: i32, %arg1: i32, %arg2: memref<32x32xf32, #tpu.memory_space<vmem>>, %arg3: memref<32x256xf32, #tpu.memory_space<vmem>>, %arg4: memref<1x256xf32, #tpu.memory_space<vmem>>, %arg5: memref<32x256xf32, #tpu.memory_space<vmem>>) attributes {dimension_semantics = [#tpu.dimension_semantics<parallel>, #tpu.dimension_semantics<parallel>], iteration_bounds = array<i64: 1, 1>, scalar_prefetch = 0 : i64, scratch_operands = 0 : i64, tpu.core_type = #tpu.core_type<tc>, window_params = [{transform_indices = @transform_0, window_bounds = array<i64: 32, 32>}, {transform_indices = @transform_1, window_bounds = array<i64: 32, 256>}, {transform_indices = @transform_2, window_bounds = array<i64: 1, 256>}, {transform_indices = @transform_3, window_bounds = array<i64: 32, 256>}]} {
    %c0 = arith.constant 0 : index
    %c0_0 = arith.constant 0 : index
    %0 = vector.load %arg2[%c0, %c0_0] : memref<32x32xf32, #tpu.memory_space<vmem>>, vector<32x32xf32>
    %c0_1 = arith.constant 0 : index
    %c0_2 = arith.constant 0 : index
    %1 = vector.load %arg3[%c0_1, %c0_2] : memref<32x256xf32, #tpu.memory_space<vmem>>, vector<32x256xf32>
    %cst = arith.constant dense<0.000000e+00> : vector<32x256xf32>
    %2 = tpu.matmul %0, %1, %cst {dimension_numbers = #tpu.dot_dimension_numbers<[1], [0], [0], [1], [0, 0, 1, 1], [], []>} : vector<32x32xf32>, vector<32x256xf32>, vector<32x256xf32> -> vector<32x256xf32>
    %c0_3 = arith.constant 0 : index
    %c0_4 = arith.constant 0 : index
    %3 = vector.load %arg4[%c0_3, %c0_4] : memref<1x256xf32, #tpu.memory_space<vmem>>, vector<1x256xf32>
    %4 = vector.broadcast %3 : vector<1x256xf32> to vector<32x256xf32>
    %5 = arith.addf %2, %4 : vector<32x256xf32>
    %c0_5 = arith.constant 0 : index
    %c0_6 = arith.constant 0 : index
    %6 = vector.load %arg5[%c0_5, %c0_6] : memref<32x256xf32, #tpu.memory_space<vmem>>, vector<32x256xf32>
    tpu.vector_store %arg5[%c0_5, %c0_6], %5 {strides = array<i32>} : memref<32x256xf32, #tpu.memory_space<vmem>>, vector<32x256xf32>,
    return
  }
  func.func @transform_0(%arg0: i32, %arg1: i32) -> (i32, i32) {
    %c0_i32 = arith.constant 0 : i32
    %c0_i32_0 = arith.constant 0 : i32
    return %arg0, %c0_i32 : i32, i32
  }
  func.func @transform_1(%arg0: i32, %arg1: i32) -> (i32, i32) {
    %c0_i32 = arith.constant 0 : i32
    %c0_i32_0 = arith.constant 0 : i32
    return %c0_i32, %arg1 : i32, i32
  }
  func.func @transform_2(%arg0: i32, %arg1: i32) -> (i32, i32) {
    %c0_i32 = arith.constant 0 : i32
    %c0_i32_0 = arith.constant 0 : i32
    return %c0_i32, %arg1 : i32, i32
  }
  func.func @transform_3(%arg0: i32, %arg1: i32) -> (i32, i32) {
    %c0_i32 = arith.constant 0 : i32
    return %arg0, %arg1 : i32, i32
  }
}

module attributes {stable_mosaic.version = 11 : i64} {
  func.func @_matmul_bias_kernel(%arg0: i32, %arg1: i32, %arg2: memref<32x32xf32, #tpu.memory_space<vmem>>, %arg3: memref<32x128xf32, #tpu.memory_space<vmem>>, %arg4: memref<1x128xf32, #tpu.memory_space<vmem>>, %arg5: memref<32x128xf32, #tpu.memory_space<vmem>>) attributes {dimension_semantics = [#tpu.dimension_semantics<parallel>, #tpu.dimension_semantics<parallel>], iteration_bounds = array<i64: 1, 1>, scalar_prefetch = 0 : i64, scratch_operands = 0 : i64, tpu.core_type = #tpu.core_type<tc>, window_params = [{transform_indices = @transform_0, window_bounds = array<i64: 32, 32>}, {transform_indices = @transform_1, window_bounds = array<i64: 32, 128>}, {transform_indices = @transform_2, window_bounds = array<i64: 1, 128>}, {transform_indices = @transform_3, window_bounds = array<i64: 32, 128>}]} {
    %c0 = arith.constant 0 : index
    %c0_0 = arith.constant 0 : index
    %0 = vector.load %arg2[%c0, %c0_0] : memref<32x32xf32, #tpu.memory_space<vmem>>, vector<32x32xf32>
    %c0_1 = arith.constant 0 : index
    %c0_2 = arith.constant 0 : index
    %1 = vector.load %arg3[%c0_1, %c0_2] : memref<32x128xf32, #tpu.memory_space<vmem>>, vector<32x128xf32>
    %cst = arith.constant dense<0.000000e+00> : vector<32x128xf32>
    %2 = tpu.matmul %0, %1, %cst {dimension_numbers = #tpu.dot_dimension_numbers<[1], [0], [0], [1], [0, 0, 1, 1], [], []>} : vector<32x32xf32>, vector<32x128xf32>, vector<32x128xf32> -> vector<32x128xf32>
    %c0_3 = arith.constant 0 : index
    %c0_4 = arith.constant 0 : index
    %3 = vector.load %arg4[%c0_3, %c0_4] : memref<1x128xf32, #tpu.memory_space<vmem>>, vector<1x128xf32>
    %4 = vector.broadcast %3 : vector<1x128xf32> to vector<32x128xf32>
    %5 = arith.addf %2, %4 : vector<32x128xf32>
    %c0_5 = arith.constant 0 : index
    %c0_6 = arith.constant 0 : index
    %6 = vector.load %arg5[%c0_5, %c0_6] : memref<32x128xf32, #tpu.memory_space<vmem>>, vector<32x128xf32>
    tpu.vector_store %arg5[%c0_5, %c0_6], %5 {strides = array<i32>} : memref<32x128xf32, #tpu.memory_space<vmem>>, vector<32x128xf32>,
    return
  }
  func.func @transform_0(%arg0: i32, %arg1: i32) -> (i32, i32) {
    %c0_i32 = arith.constant 0 : i32
    %c0_i32_0 = arith.constant 0 : i32
    return %arg0, %c0_i32 : i32, i32
  }
  func.func @transform_1(%arg0: i32, %arg1: i32) -> (i32, i32) {
    %c0_i32 = arith.constant 0 : i32
    %c0_i32_0 = arith.constant 0 : i32
    return %c0_i32, %arg1 : i32, i32
  }
  func.func @transform_2(%arg0: i32, %arg1: i32) -> (i32, i32) {
    %c0_i32 = arith.constant 0 : i32
    %c0_i32_0 = arith.constant 0 : i32
    return %c0_i32, %arg1 : i32, i32
  }
  func.func @transform_3(%arg0: i32, %arg1: i32) -> (i32, i32) {
    %c0_i32 = arith.constant 0 : i32
    return %arg0, %arg1 : i32, i32
  }
}

</mosaic_0001>

<llo_original>
// kernel: lstm_block_forward.5
$region0: #{lstm_block_forward.5}
  #allocation0 [shape = 'u32[]', space=smem, size = 0x4, offset = 0x4, fixed_abs, tag = 'smem constant byte address 0x4 - core index']
  #allocation1 [shape = 'u32[144,128]{1,0:T(1,128)}', space=vmem, size = 0x12000, scoped, tag = 'internal scratch']
  %s0 = inlined_call_operand.vmem [shape: f32[32,16], index: 0, kind: input, shape index: {}]
  %s1 = inlined_call_operand.vmem [shape: f32[16,256], index: 1, kind: input, shape index: {}]
  %s2 = inlined_call_operand.vmem [shape: f32[1,256], index: 2, kind: input, shape index: {}]
  %s3 = inlined_call_operand.vmem [shape: f32[32,256], index: 3, kind: output, shape index: {}]
  %s4 = sld [smem:[#allocation0]]
  $region22: #{lstm_block_forward.5} parent=0
    _
  %s6 = ssub.s32 1, %s4
  %s7 = scalar_select 0, %s6, %s4
  // Predicated region
  $region2: #{lstm_block_forward.5} parent=0 // pred_check
    _
  $region3: #{lstm_block_forward.5} parent=0 // pred_check_branch
    %9 = sbr.rel (0) target = $region5
  $region4: #{lstm_block_forward.5} parent=0 // pred_region
    _
  $region5: #{lstm_block_forward.5} parent=0 // pred_fallthru
    _
  // Predicated region
  $region6: #{lstm_block_forward.5} parent=0 // pred_check
    _
  $region7: #{lstm_block_forward.5} parent=0 // pred_check_branch
    %11 = sbr.rel (0) target = $region9
  $region8: #{lstm_block_forward.5} parent=0 // pred_region
    _
  $region9: #{lstm_block_forward.5} parent=0 // pred_fallthru
    _
  // Predicated region
  $region10: #{lstm_block_forward.5} parent=0 // pred_check
    _
  $region11: #{lstm_block_forward.5} parent=0 // pred_check_branch
    %13 = sbr.rel (0) target = $region13
  $region12: #{lstm_block_forward.5} parent=0 // pred_region
    _
  $region13: #{lstm_block_forward.5} parent=0 // pred_fallthru
    _
  %v14 = vld [vmem:[%s0] sm:$0xff]
  %v15 = vld [vmem:[%s0 + $0x8] sm:$0xff]
  %v16 = vld [vmem:[%s0 + $0x10] sm:$0xff]
  %v17 = vld [vmem:[%s0 + $0x18] sm:$0xff]
  %v18 = vld [vmem:[%s1] sm:$0xff]
  %v19 = vld [vmem:[%s1 + $0x8] sm:$0xff]
  %v20 = vld [vmem:[%s1 + $0x10] sm:$0xff]
  %v21 = vld [vmem:[%s1 + $0x18] sm:$0xff]
  %v22 = vld [vmem:[%s2] sm:$0x3]
  %v24 = vlaneseq
  %v25 = vshrl.u32 %v24, 7
  %v26 = vsub.s32 0, %v25
  %v27 = vrot.slane %v22, %v26
  %v28 = vlaneseq
  %v29 = vshrl.u32 %v28, 7
  %v30 = vsub.s32 1, %v29
  %v31 = vrot.slane %v22, %v30
  %vm34 = vcmask 130048
  %v36 = vsel %vm34, %v14, 0
  %v39 = vsel %vm34, %v15, 0
  %v42 = vsel %vm34, %v16, 0
  %v45 = vsel %vm34, %v17, 0
  %47 = vmatprep.subr.mxu0 %v19
  %48 = vmatpush1.msra.mxu0 %v18
  %49 = vmatprep.subr.mxu0 %v21
  %50 = vmatpush1.msra.mxu0 %v20
  %51 = vmatprep.subr.mxu0 0.0
  %52 = vmatpush1.msra.mxu0 0.0
  %53 = vmatprep.subr.mxu0 0.0
  %54 = vmatpush1.msra.mxu0 0.0
  %55 = vmatprep.subr.mxu0 0.0
  %56 = vmatpush1.msra.mxu0 0.0
  %57 = vmatprep.subr.mxu0 0.0
  %58 = vmatpush1.msra.mxu0 0.0
  %59 = vmatprep.subr.mxu0 0.0
  %60 = vmatpush1.msra.mxu0 0.0
  %61 = vmatprep.subr.mxu0 0.0
  %62 = vmatpush1.msra.mxu0 0.0
  %63 = vmatprep.subr.mxu0 0.0
  %64 = vmatpush1.msra.mxu0 0.0
  %65 = vmatprep.subr.mxu0 0.0
  %66 = vmatpush1.msra.mxu0 0.0
  %67 = vmatprep.subr.mxu0 0.0
  %68 = vmatpush1.msra.mxu0 0.0
  %69 = vmatprep.subr.mxu0 0.0
  %70 = vmatpush1.msra.mxu0 0.0
  %71 = vmatprep.subr.mxu0 0.0
  %72 = vmatpush1.msra.mxu0 0.0
  %73 = vmatprep.subr.mxu0 0.0
  %74 = vmatpush1.msra.mxu0 0.0
  %75 = vmatprep.subr.mxu0 0.0
  %76 = vmatpush1.msra.mxu0 0.0
  %77 = vmatprep.subr.mxu0 0.0
  %78 = vmatpush1.msra.mxu0 0.0
  %79 = vmatprep.subr.mxu0 0.0
  %80 = vmatpush1.msra.mxu0 0.0
  %81 = vmatprep.subr.mxu0 0.0
  %82 = vmatpush1.msra.mxu0 0.0
  %83 = vmatprep.subr.mxu0 0.0
  %84 = vmatpush1.msra.mxu0 0.0
  %85 = vmatprep.subr.mxu0 0.0
  %86 = vmatpush1.msra.mxu0 0.0
  %87 = vmatprep.subr.mxu0 0.0
  %88 = vmatpush1.msra.mxu0 0.0
  %89 = vmatprep.subr.mxu0 0.0
  %90 = vmatpush1.msra.mxu0 0.0
  %91 = vmatprep.subr.mxu0 0.0
  %92 = vmatpush1.msra.mxu0 0.0
  %93 = vmatprep.subr.mxu0 0.0
  %94 = vmatpush1.msra.mxu0 0.0
  %95 = vmatprep.subr.mxu0 0.0
  %96 = vmatpush1.msra.mxu0 0.0
  %97 = vmatprep.subr.mxu0 0.0
  %98 = vmatpush1.msra.mxu0 0.0
  %99 = vmatprep.subr.mxu0 0.0
  %100 = vmatpush1.msra.mxu0 0.0
  %101 = vmatprep.subr.mxu0 0.0
  %102 = vmatpush1.msra.mxu0 0.0
  %103 = vmatprep.subr.mxu0 0.0
  %104 = vmatpush1.msra.mxu0 0.0
  %105 = vmatprep.subr.mxu0 0.0
  %106 = vmatpush1.msra.mxu0 0.0
  %107 = vmatprep.subr.mxu0 0.0
  %108 = vmatpush1.msra.mxu0 0.0
  %109 = vmatprep.subr.mxu0 0.0
  %110 = vmatpush1.msra.mxu0 0.0
  %111 = vmatprep.mubr.f32.mxu0 0.0
  %112 = vmatmul.mubr.f32.gmra.mrb[0].mxu0 %v36
  %v113 = vpop.f32.mrb[0].mxu0
  %v114 = vadd.f32 %v27, %v113
  %v115 = vpop.f32.mrb[0].mxu0
  %v116 = vadd.f32 %v31, %v115
  %117 = vmatprep.mubr.f32.mxu0 0.0
  %118 = vmatmul.mubr.f32.gmra.mrb[0].mxu0 %v39
  %v119 = vpop.f32.mrb[0].mxu0
  %v120 = vadd.f32 %v27, %v119
  %v121 = vpop.f32.mrb[0].mxu0
  %v122 = vadd.f32 %v31, %v121
  %123 = vmatprep.mubr.f32.mxu0 0.0
  %124 = vmatmul.mubr.f32.gmra.mrb[0].mxu0 %v42
  %v125 = vpop.f32.mrb[0].mxu0
  %v126 = vadd.f32 %v27, %v125
  %v127 = vpop.f32.mrb[0].mxu0
  %v128 = vadd.f32 %v31, %v127
  %129 = vmatprep.mubr.f32.mxu0 0.0
  %130 = vmatmul.mubr.f32.gmra.mrb[0].mxu0 %v45
  %v131 = vpop.f32.mrb[0].mxu0
  %v132 = vadd.f32 %v27, %v131
  %v133 = vpop.f32.mrb[0].mxu0
  %v134 = vadd.f32 %v31, %v133
  %135 = vdwg.mxu0
  %136 = vst [vmem:[%s3] sm:$0xff] %v114
  %137 = vst [vmem:[%s3 + $0x8] sm:$0xff] %v116
  %138 = vst [vmem:[%s3 + $0x10] sm:$0xff] %v120
  %139 = vst [vmem:[%s3 + $0x18] sm:$0xff] %v122
  %140 = vst [vmem:[%s3 + $0x20] sm:$0xff] %v126
  %141 = vst [vmem:[%s3 + $0x28] sm:$0xff] %v128
  %142 = vst [vmem:[%s3 + $0x30] sm:$0xff] %v132
  %143 = vst [vmem:[%s3 + $0x38] sm:$0xff] %v134
  // Predicated region
  $region14: #{lstm_block_forward.5} parent=0 // pred_check
    _
  $region15: #{lstm_block_forward.5} parent=0 // pred_check_branch
    %145 = sbr.rel (0) target = $region17
  $region16: #{lstm_block_forward.5} parent=0 // pred_region
    _
  $region17: #{lstm_block_forward.5} parent=0 // pred_fallthru
    _
  // Predicated region
  $region18: #{lstm_block_forward.5} parent=0 // pred_check
    _
  $region19: #{lstm_block_forward.5} parent=0 // pred_check_branch
    %147 = sbr.rel (0) target = $region21
  $region20: #{lstm_block_forward.5} parent=0 // pred_region
    _
  $region21: #{lstm_block_forward.5} parent=0 // pred_fallthru
    _

// kernel: lstm_block_forward.7
$region0: #{lstm_block_forward.7}
  #allocation0 [shape = 'u32[]', space=smem, size = 0x4, offset = 0x4, fixed_abs, tag = 'smem constant byte address 0x4 - core index']
  #allocation1 [shape = 'u32[144,128]{1,0:T(1,128)}', space=vmem, size = 0x12000, scoped, tag = 'internal scratch']
  %s0 = inlined_call_operand.vmem [shape: f32[32,32], index: 0, kind: input, shape index: {}]
  %s1 = inlined_call_operand.vmem [shape: f32[32,256], index: 1, kind: input, shape index: {}]
  %s2 = inlined_call_operand.vmem [shape: f32[1,256], index: 2, kind: input, shape index: {}]
  %s3 = inlined_call_operand.vmem [shape: f32[32,256], index: 3, kind: output, shape index: {}]
  %s4 = sld [smem:[#allocation0]]
  $region22: #{lstm_block_forward.7} parent=0
    _
  %s6 = ssub.s32 1, %s4
  %s7 = scalar_select 0, %s6, %s4
  // Predicated region
  $region2: #{lstm_block_forward.7} parent=0 // pred_check
    _
  $region3: #{lstm_block_forward.7} parent=0 // pred_check_branch
    %9 = sbr.rel (0) target = $region5
  $region4: #{lstm_block_forward.7} parent=0 // pred_region
    _
  $region5: #{lstm_block_forward.7} parent=0 // pred_fallthru
    _
  // Predicated region
  $region6: #{lstm_block_forward.7} parent=0 // pred_check
    _
  $region7: #{lstm_block_forward.7} parent=0 // pred_check_branch
    %11 = sbr.rel (0) target = $region9
  $region8: #{lstm_block_forward.7} parent=0 // pred_region
    _
  $region9: #{lstm_block_forward.7} parent=0 // pred_fallthru
    _
  // Predicated region
  $region10: #{lstm_block_forward.7} parent=0 // pred_check
    _
  $region11: #{lstm_block_forward.7} parent=0 // pred_check_branch
    %13 = sbr.rel (0) target = $region13
  $region12: #{lstm_block_forward.7} parent=0 // pred_region
    _
  $region13: #{lstm_block_forward.7} parent=0 // pred_fallthru
    _
  %v14 = vld [vmem:[%s0] sm:$0xff]
  %v15 = vld [vmem:[%s0 + $0x8] sm:$0xff]
  %v16 = vld [vmem:[%s0 + $0x10] sm:$0xff]
  %v17 = vld [vmem:[%s0 + $0x18] sm:$0xff]
  %v18 = vld [vmem:[%s1] sm:$0xff]
  %v19 = vld [vmem:[%s1 + $0x8] sm:$0xff]
  %v20 = vld [vmem:[%s1 + $0x10] sm:$0xff]
  %v21 = vld [vmem:[%s1 + $0x18] sm:$0xff]
  %v22 = vld [vmem:[%s1 + $0x20] sm:$0xff]
  %v23 = vld [vmem:[%s1 + $0x28] sm:$0xff]
  %v24 = vld [vmem:[%s1 + $0x30] sm:$0xff]
  %v25 = vld [vmem:[%s1 + $0x38] sm:$0xff]
  %v26 = vld [vmem:[%s2] sm:$0x3]
  %v28 = vlaneseq
  %v29 = vshrl.u32 %v28, 7
  %v30 = vsub.s32 0, %v29
  %v31 = vrot.slane %v26, %v30
  %v32 = vlaneseq
  %v33 = vshrl.u32 %v32, 7
  %v34 = vsub.s32 1, %v33
  %v35 = vrot.slane %v26, %v34
  %vm38 = vcmask 261120
  %v40 = vsel %vm38, %v14, 0
  %v43 = vsel %vm38, %v15, 0
  %v46 = vsel %vm38, %v16, 0
  %v49 = vsel %vm38, %v17, 0
  %51 = vmatprep.subr.mxu0 %v19
  %52 = vmatpush1.msra.mxu0 %v18
  %53 = vmatprep.subr.mxu0 %v21
  %54 = vmatpush1.msra.mxu0 %v20
  %55 = vmatprep.subr.mxu0 %v23
  %56 = vmatpush1.msra.mxu0 %v22
  %57 = vmatprep.subr.mxu0 %v25
  %58 = vmatpush1.msra.mxu0 %v24
  %59 = vmatprep.subr.mxu0 0.0
  %60 = vmatpush1.msra.mxu0 0.0
  %61 = vmatprep.subr.mxu0 0.0
  %62 = vmatpush1.msra.mxu0 0.0
  %63 = vmatprep.subr.mxu0 0.0
  %64 = vmatpush1.msra.mxu0 0.0
  %65 = vmatprep.subr.mxu0 0.0
  %66 = vmatpush1.msra.mxu0 0.0
  %67 = vmatprep.subr.mxu0 0.0
  %68 = vmatpush1.msra.mxu0 0.0
  %69 = vmatprep.subr.mxu0 0.0
  %70 = vmatpush1.msra.mxu0 0.0
  %71 = vmatprep.subr.mxu0 0.0
  %72 = vmatpush1.msra.mxu0 0.0
  %73 = vmatprep.subr.mxu0 0.0
  %74 = vmatpush1.msra.mxu0 0.0
  %75 = vmatprep.subr.mxu0 0.0
  %76 = vmatpush1.msra.mxu0 0.0
  %77 = vmatprep.subr.mxu0 0.0
  %78 = vmatpush1.msra.mxu0 0.0
  %79 = vmatprep.subr.mxu0 0.0
  %80 = vmatpush1.msra.mxu0 0.0
  %81 = vmatprep.subr.mxu0 0.0
  %82 = vmatpush1.msra.mxu0 0.0
  %83 = vmatprep.subr.mxu0 0.0
  %84 = vmatpush1.msra.mxu0 0.0
  %85 = vmatprep.subr.mxu0 0.0
  %86 = vmatpush1.msra.mxu0 0.0
  %87 = vmatprep.subr.mxu0 0.0
  %88 = vmatpush1.msra.mxu0 0.0
  %89 = vmatprep.subr.mxu0 0.0
  %90 = vmatpush1.msra.mxu0 0.0
  %91 = vmatprep.subr.mxu0 0.0
  %92 = vmatpush1.msra.mxu0 0.0
  %93 = vmatprep.subr.mxu0 0.0
  %94 = vmatpush1.msra.mxu0 0.0
  %95 = vmatprep.subr.mxu0 0.0
  %96 = vmatpush1.msra.mxu0 0.0
  %97 = vmatprep.subr.mxu0 0.0
  %98 = vmatpush1.msra.mxu0 0.0
  %99 = vmatprep.subr.mxu0 0.0
  %100 = vmatpush1.msra.mxu0 0.0
  %101 = vmatprep.subr.mxu0 0.0
  %102 = vmatpush1.msra.mxu0 0.0
  %103 = vmatprep.subr.mxu0 0.0
  %104 = vmatpush1.msra.mxu0 0.0
  %105 = vmatprep.subr.mxu0 0.0
  %106 = vmatpush1.msra.mxu0 0.0
  %107 = vmatprep.subr.mxu0 0.0
  %108 = vmatpush1.msra.mxu0 0.0
  %109 = vmatprep.subr.mxu0 0.0
  %110 = vmatpush1.msra.mxu0 0.0
  %111 = vmatprep.subr.mxu0 0.0
  %112 = vmatpush1.msra.mxu0 0.0
  %113 = vmatprep.subr.mxu0 0.0
  %114 = vmatpush1.msra.mxu0 0.0
  %115 = vmatprep.mubr.f32.mxu0 0.0
  %116 = vmatmul.mubr.f32.gmra.mrb[0].mxu0 %v40
  %v117 = vpop.f32.mrb[0].mxu0
  %v118 = vadd.f32 %v31, %v117
  %v119 = vpop.f32.mrb[0].mxu0
  %v120 = vadd.f32 %v35, %v119
  %121 = vmatprep.mubr.f32.mxu0 0.0
  %122 = vmatmul.mubr.f32.gmra.mrb[0].mxu0 %v43
  %v123 = vpop.f32.mrb[0].mxu0
  %v124 = vadd.f32 %v31, %v123
  %v125 = vpop.f32.mrb[0].mxu0
  %v126 = vadd.f32 %v35, %v125
  %127 = vmatprep.mubr.f32.mxu0 0.0
  %128 = vmatmul.mubr.f32.gmra.mrb[0].mxu0 %v46
  %v129 = vpop.f32.mrb[0].mxu0
  %v130 = vadd.f32 %v31, %v129
  %v131 = vpop.f32.mrb[0].mxu0
  %v132 = vadd.f32 %v35, %v131
  %133 = vmatprep.mubr.f32.mxu0 0.0
  %134 = vmatmul.mubr.f32.gmra.mrb[0].mxu0 %v49
  %v135 = vpop.f32.mrb[0].mxu0
  %v136 = vadd.f32 %v31, %v135
  %v137 = vpop.f32.mrb[0].mxu0
  %v138 = vadd.f32 %v35, %v137
  %139 = vdwg.mxu0
  %140 = vst [vmem:[%s3] sm:$0xff] %v118
  %141 = vst [vmem:[%s3 + $0x8] sm:$0xff] %v120
  %142 = vst [vmem:[%s3 + $0x10] sm:$0xff] %v124
  %143 = vst [vmem:[%s3 + $0x18] sm:$0xff] %v126
  %144 = vst [vmem:[%s3 + $0x20] sm:$0xff] %v130
  %145 = vst [vmem:[%s3 + $0x28] sm:$0xff] %v132
  %146 = vst [vmem:[%s3 + $0x30] sm:$0xff] %v136
  %147 = vst [vmem:[%s3 + $0x38] sm:$0xff] %v138
  // Predicated region
  $region14: #{lstm_block_forward.7} parent=0 // pred_check
    _
  $region15: #{lstm_block_forward.7} parent=0 // pred_check_branch
    %149 = sbr.rel (0) target = $region17
  $region16: #{lstm_block_forward.7} parent=0 // pred_region
    _
  $region17: #{lstm_block_forward.7} parent=0 // pred_fallthru
    _
  // Predicated region
  $region18: #{lstm_block_forward.7} parent=0 // pred_check
    _
  $region19: #{lstm_block_forward.7} parent=0 // pred_check_branch
    %151 = sbr.rel (0) target = $region21
  $region20: #{lstm_block_forward.7} parent=0 // pred_region
    _
  $region21: #{lstm_block_forward.7} parent=0 // pred_fallthru
    _

// kernel: lstm_block_forward.9
$region0: #{lstm_block_forward.9}
  #allocation0 [shape = 'u32[]', space=smem, size = 0x4, offset = 0x4, fixed_abs, tag = 'smem constant byte address 0x4 - core index']
  #allocation1 [shape = 'u32[144,128]{1,0:T(1,128)}', space=vmem, size = 0x12000, scoped, tag = 'internal scratch']
  %s0 = inlined_call_operand.vmem [shape: f32[32,32], index: 0, kind: input, shape index: {}]
  %s1 = inlined_call_operand.vmem [shape: f32[32,128], index: 1, kind: input, shape index: {}]
  %s2 = inlined_call_operand.vmem [shape: f32[1,128], index: 2, kind: input, shape index: {}]
  %s3 = inlined_call_operand.vmem [shape: f32[32,128], index: 3, kind: output, shape index: {}]
  %s4 = sld [smem:[#allocation0]]
  $region22: #{lstm_block_forward.9} parent=0
    _
  %s6 = ssub.s32 1, %s4
  %s7 = scalar_select 0, %s6, %s4
  // Predicated region
  $region2: #{lstm_block_forward.9} parent=0 // pred_check
    _
  $region3: #{lstm_block_forward.9} parent=0 // pred_check_branch
    %9 = sbr.rel (0) target = $region5
  $region4: #{lstm_block_forward.9} parent=0 // pred_region
    _
  $region5: #{lstm_block_forward.9} parent=0 // pred_fallthru
    _
  // Predicated region
  $region6: #{lstm_block_forward.9} parent=0 // pred_check
    _
  $region7: #{lstm_block_forward.9} parent=0 // pred_check_branch
    %11 = sbr.rel (0) target = $region9
  $region8: #{lstm_block_forward.9} parent=0 // pred_region
    _
  $region9: #{lstm_block_forward.9} parent=0 // pred_fallthru
    _
  // Predicated region
  $region10: #{lstm_block_forward.9} parent=0 // pred_check
    _
  $region11: #{lstm_block_forward.9} parent=0 // pred_check_branch
    %13 = sbr.rel (0) target = $region13
  $region12: #{lstm_block_forward.9} parent=0 // pred_region
    _
  $region13: #{lstm_block_forward.9} parent=0 // pred_fallthru
    _
  %v14 = vld [vmem:[%s0] sm:$0xff]
  %v15 = vld [vmem:[%s0 + $0x8] sm:$0xff]
  %v16 = vld [vmem:[%s0 + $0x10] sm:$0xff]
  %v17 = vld [vmem:[%s0 + $0x18] sm:$0xff]
  %v18 = vld [vmem:[%s1] sm:$0xff]
  %v19 = vld [vmem:[%s1 + $0x8] sm:$0xff]
  %v20 = vld [vmem:[%s1 + $0x10] sm:$0xff]
  %v21 = vld [vmem:[%s1 + $0x18] sm:$0xff]
  %v22 = vld [vmem:[%s2] sm:$0x1]
  %v24 = vlaneseq
  %v25 = vshrl.u32 %v24, 7
  %v26 = vsub.s32 0, %v25
  %v27 = vrot.slane %v22, %v26
  %vm29 = vcmask 261120
  %v31 = vsel %vm29, %v14, 0
  %v34 = vsel %vm29, %v15, 0
  %v37 = vsel %vm29, %v16, 0
  %v40 = vsel %vm29, %v17, 0
  %42 = vmatprep.subr.mxu0 0.0
  %43 = vmatpush1.msra.mxu0 %v18
  %44 = vmatprep.subr.mxu0 0.0
  %45 = vmatpush1.msra.mxu0 %v19
  %46 = vmatprep.subr.mxu0 0.0
  %47 = vmatpush1.msra.mxu0 %v20
  %48 = vmatprep.subr.mxu0 0.0
  %49 = vmatpush1.msra.mxu0 %v21
  %50 = vmatprep.subr.mxu0 0.0
  %51 = vmatpush1.msra.mxu0 0.0
  %52 = vmatprep.subr.mxu0 0.0
  %53 = vmatpush1.msra.mxu0 0.0
  %54 = vmatprep.subr.mxu0 0.0
  %55 = vmatpush1.msra.mxu0 0.0
  %56 = vmatprep.subr.mxu0 0.0
  %57 = vmatpush1.msra.mxu0 0.0
  %58 = vmatprep.subr.mxu0 0.0
  %59 = vmatpush1.msra.mxu0 0.0
  %60 = vmatprep.subr.mxu0 0.0
  %61 = vmatpush1.msra.mxu0 0.0
  %62 = vmatprep.subr.mxu0 0.0
  %63 = vmatpush1.msra.mxu0 0.0
  %64 = vmatprep.subr.mxu0 0.0
  %65 = vmatpush1.msra.mxu0 0.0
  %66 = vmatprep.subr.mxu0 0.0
  %67 = vmatpush1.msra.mxu0 0.0
  %68 = vmatprep.subr.mxu0 0.0
  %69 = vmatpush1.msra.mxu0 0.0
  %70 = vmatprep.subr.mxu0 0.0
  %71 = vmatpush1.msra.mxu0 0.0
  %72 = vmatprep.subr.mxu0 0.0
  %73 = vmatpush1.msra.mxu0 0.0
  %74 = vmatprep.subr.mxu0 0.0
  %75 = vmatpush1.msra.mxu0 0.0
  %76 = vmatprep.subr.mxu0 0.0
  %77 = vmatpush1.msra.mxu0 0.0
  %78 = vmatprep.subr.mxu0 0.0
  %79 = vmatpush1.msra.mxu0 0.0
  %80 = vmatprep.subr.mxu0 0.0
  %81 = vmatpush1.msra.mxu0 0.0
  %82 = vmatprep.subr.mxu0 0.0
  %83 = vmatpush1.msra.mxu0 0.0
  %84 = vmatprep.subr.mxu0 0.0
  %85 = vmatpush1.msra.mxu0 0.0
  %86 = vmatprep.subr.mxu0 0.0
  %87 = vmatpush1.msra.mxu0 0.0
  %88 = vmatprep.subr.mxu0 0.0
  %89 = vmatpush1.msra.mxu0 0.0
  %90 = vmatprep.subr.mxu0 0.0
  %91 = vmatpush1.msra.mxu0 0.0
  %92 = vmatprep.subr.mxu0 0.0
  %93 = vmatpush1.msra.mxu0 0.0
  %94 = vmatprep.subr.mxu0 0.0
  %95 = vmatpush1.msra.mxu0 0.0
  %96 = vmatprep.subr.mxu0 0.0
  %97 = vmatpush1.msra.mxu0 0.0
  %98 = vmatprep.subr.mxu0 0.0
  %99 = vmatpush1.msra.mxu0 0.0
  %100 = vmatprep.subr.mxu0 0.0
  %101 = vmatpush1.msra.mxu0 0.0
  %102 = vmatprep.subr.mxu0 0.0
  %103 = vmatpush1.msra.mxu0 0.0
  %104 = vmatprep.subr.mxu0 0.0
  %105 = vmatpush1.msra.mxu0 0.0
  %106 = vmatprep.mubr.f32.mxu0 0.0
  %107 = vmatmul.mubr.f32.gmra.mrb[0].mxu0 %v31
  %v108 = vpop.f32.mrb[0].mxu0
  %v109 = vadd.f32 %v27, %v108
  %v110 = vpop.f32.mrb[0].mxu0
  %111 = vmatprep.mubr.f32.mxu0 0.0
  %112 = vmatmul.mubr.f32.gmra.mrb[0].mxu0 %v34
  %v113 = vpop.f32.mrb[0].mxu0
  %v114 = vadd.f32 %v27, %v113
  %v115 = vpop.f32.mrb[0].mxu0
  %116 = vmatprep.mubr.f32.mxu0 0.0
  %117 = vmatmul.mubr.f32.gmra.mrb[0].mxu0 %v37
  %v118 = vpop.f32.mrb[0].mxu0
  %v119 = vadd.f32 %v27, %v118
  %v120 = vpop.f32.mrb[0].mxu0
  %121 = vmatprep.mubr.f32.mxu0 0.0
  %122 = vmatmul.mubr.f32.gmra.mrb[0].mxu0 %v40
  %v123 = vpop.f32.mrb[0].mxu0
  %v124 = vadd.f32 %v27, %v123
  %v125 = vpop.f32.mrb[0].mxu0
  %126 = vdwg.mxu0
  %127 = vst [vmem:[%s3] sm:$0xff] %v109
  %128 = vst [vmem:[%s3 + $0x8] sm:$0xff] %v114
  %129 = vst [vmem:[%s3 + $0x10] sm:$0xff] %v119
  %130 = vst [vmem:[%s3 + $0x18] sm:$0xff] %v124
  // Predicated region
  $region14: #{lstm_block_forward.9} parent=0 // pred_check
    _
  $region15: #{lstm_block_forward.9} parent=0 // pred_check_branch
    %132 = sbr.rel (0) target = $region17
  $region16: #{lstm_block_forward.9} parent=0 // pred_region
    _
  $region17: #{lstm_block_forward.9} parent=0 // pred_fallthru
    _
  // Predicated region
  $region18: #{lstm_block_forward.9} parent=0 // pred_check
    _
  $region19: #{lstm_block_forward.9} parent=0 // pred_check_branch
    %134 = sbr.rel (0) target = $region21
  $region20: #{lstm_block_forward.9} parent=0 // pred_region
    _
  $region21: #{lstm_block_forward.9} parent=0 // pred_fallthru
    _

// kernel: lstm_block_forward.6
$region0: #{lstm_block_forward.6}
  #allocation0 [shape = 'u32[]', space=smem, size = 0x4, offset = 0x4, fixed_abs, tag = 'smem constant byte address 0x4 - core index']
  #allocation1 [shape = 'u32[144,128]{1,0:T(1,128)}', space=vmem, size = 0x12000, scoped, tag = 'internal scratch']
  #allocation2 [shape = 'f32[4,64]{1,0:T(4,128)}', space=vmem, size = 0x800, scoped, tag = 'scratch operand']
  #allocation3 [shape = 'f32[4,64]{1,0:T(4,128)}', space=vmem, size = 0x800, scoped, tag = 'scratch operand']
  %s0 = inlined_call_operand.vmem [shape: f32[8,4,256], index: 0, kind: input, shape index: {}]
  %s1 = inlined_call_operand.vmem [shape: f32[64,256], index: 1, kind: input, shape index: {}]
  %s2 = inlined_call_operand.vmem [shape: f32[8,4,64], index: 2, kind: output, shape index: {}]
  %s3 = sld [smem:[#allocation0]]
  $region22: #{lstm_block_forward.6} parent=0
    _
  %s5 = ssub.s32 1, %s3
  %s6 = scalar_select 0, %s5, %s3
  // Predicated region
  $region2: #{lstm_block_forward.6} parent=0 // pred_check
    _
  $region3: #{lstm_block_forward.6} parent=0 // pred_check_branch
    %8 = sbr.rel (0) target = $region5
  $region4: #{lstm_block_forward.6} parent=0 // pred_region
    _
  $region5: #{lstm_block_forward.6} parent=0 // pred_fallthru
    _
  // Predicated region
  $region6: #{lstm_block_forward.6} parent=0 // pred_check
    _
  $region7: #{lstm_block_forward.6} parent=0 // pred_check_branch
    %10 = sbr.rel (0) target = $region9
  $region8: #{lstm_block_forward.6} parent=0 // pred_region
    _
  $region9: #{lstm_block_forward.6} parent=0 // pred_fallthru
    _
  %p11 = scmp.eq.s32.totalorder 0, 0
  // Predicated region
  $region10: #{lstm_block_forward.6} parent=0 // pred_check
    %p12 = pneg %p11
  $region11: #{lstm_block_forward.6} parent=0 // pred_check_branch
    %14 = sbr.rel (%p12) target = $region13
  $region12: #{lstm_block_forward.6} parent=0 // pred_region
    %vm15 = vcmask 519168
    %16 = vst.msk [vmem:[#allocation2] sm:$0xf] %vm15, 0.0
    %17 = vst.msk [vmem:[#allocation3] sm:$0xf] %vm15, 0.0
  $region13: #{lstm_block_forward.6} parent=0 // pred_fallthru
    _
  %v18 = vld [vmem:[%s0] sm:$0xff]
  %v19 = vld [vmem:[#allocation2] sm:$0xf]
  %v20 = vld [vmem:[%s1] sm:$0xff]
  %v21 = vld [vmem:[%s1 + $0x8] sm:$0xff]
  %v22 = vld [vmem:[%s1 + $0x10] sm:$0xff]
  %v23 = vld [vmem:[%s1 + $0x18] sm:$0xff]
  %v24 = vld [vmem:[%s1 + $0x20] sm:$0xff]
  %v25 = vld [vmem:[%s1 + $0x28] sm:$0xff]
  %v26 = vld [vmem:[%s1 + $0x30] sm:$0xff]
  %v27 = vld [vmem:[%s1 + $0x38] sm:$0xff]
  %v28 = vld [vmem:[%s1 + $0x40] sm:$0xff]
  %v29 = vld [vmem:[%s1 + $0x48] sm:$0xff]
  %v30 = vld [vmem:[%s1 + $0x50] sm:$0xff]
  %v31 = vld [vmem:[%s1 + $0x58] sm:$0xff]
  %v32 = vld [vmem:[%s1 + $0x60] sm:$0xff]
  %v33 = vld [vmem:[%s1 + $0x68] sm:$0xff]
  %v34 = vld [vmem:[%s1 + $0x70] sm:$0xff]
  %v35 = vld [vmem:[%s1 + $0x78] sm:$0xff]
  %vm36 = vcmask 523264
  %v38 = vsel %vm36, %v19, 0
  %40 = vmatprep.subr.mxu0 %v21
  %41 = vmatpush1.msra.mxu0 %v20
  %42 = vmatprep.subr.mxu0 %v23
  %43 = vmatpush1.msra.mxu0 %v22
  %44 = vmatprep.subr.mxu0 %v25
  %45 = vmatpush1.msra.mxu0 %v24
  %46 = vmatprep.subr.mxu0 %v27
  %47 = vmatpush1.msra.mxu0 %v26
  %48 = vmatprep.subr.mxu0 %v29
  %49 = vmatpush1.msra.mxu0 %v28
  %50 = vmatprep.subr.mxu0 %v31
  %51 = vmatpush1.msra.mxu0 %v30
  %52 = vmatprep.subr.mxu0 %v33
  %53 = vmatpush1.msra.mxu0 %v32
  %54 = vmatprep.subr.mxu0 %v35
  %55 = vmatpush1.msra.mxu0 %v34
  %56 = vmatprep.subr.mxu0 0.0
  %57 = vmatpush1.msra.mxu0 0.0
  %58 = vmatprep.subr.mxu0 0.0
  %59 = vmatpush1.msra.mxu0 0.0
  %60 = vmatprep.subr.mxu0 0.0
  %61 = vmatpush1.msra.mxu0 0.0
  %62 = vmatprep.subr.mxu0 0.0
  %63 = vmatpush1.msra.mxu0 0.0
  %64 = vmatprep.subr.mxu0 0.0
  %65 = vmatpush1.msra.mxu0 0.0
  %66 = vmatprep.subr.mxu0 0.0
  %67 = vmatpush1.msra.mxu0 0.0
  %68 = vmatprep.subr.mxu0 0.0
  %69 = vmatpush1.msra.mxu0 0.0
  %70 = vmatprep.subr.mxu0 0.0
  %71 = vmatpush1.msra.mxu0 0.0
  %72 = vmatprep.subr.mxu0 0.0
  %73 = vmatpush1.msra.mxu0 0.0
  %74 = vmatprep.subr.mxu0 0.0
  %75 = vmatpush1.msra.mxu0 0.0
  %76 = vmatprep.subr.mxu0 0.0
  %77 = vmatpush1.msra.mxu0 0.0
  %78 = vmatprep.subr.mxu0 0.0
  %79 = vmatpush1.msra.mxu0 0.0
  %80 = vmatprep.subr.mxu0 0.0
  %81 = vmatpush1.msra.mxu0 0.0
  %82 = vmatprep.subr.mxu0 0.0
  %83 = vmatpush1.msra.mxu0 0.0
  %84 = vmatprep.subr.mxu0 0.0
  %85 = vmatpush1.msra.mxu0 0.0
  %86 = vmatprep.subr.mxu0 0.0
  %87 = vmatpush1.msra.mxu0 0.0
  %88 = vmatprep.subr.mxu0 0.0
  %89 = vmatpush1.msra.mxu0 0.0
  %90 = vmatprep.subr.mxu0 0.0
  %91 = vmatpush1.msra.mxu0 0.0
  %92 = vmatprep.subr.mxu0 0.0
  %93 = vmatpush1.msra.mxu0 0.0
  %94 = vmatprep.subr.mxu0 0.0
  %95 = vmatpush1.msra.mxu0 0.0
  %96 = vmatprep.subr.mxu0 0.0
  %97 = vmatpush1.msra.mxu0 0.0
  %98 = vmatprep.subr.mxu0 0.0
  %99 = vmatpush1.msra.mxu0 0.0
  %100 = vmatprep.subr.mxu0 0.0
  %101 = vmatpush1.msra.mxu0 0.0
  %102 = vmatprep.subr.mxu0 0.0
  %103 = vmatpush1.msra.mxu0 0.0
  %104 = vmatprep.mubr.f32.mxu0 0.0
  %105 = vmatmul.mubr.f32.gmra.mrb[0].mxu0 %v38
  %v106 = vpop.f32.mrb[0].mxu0
  %v107 = vadd.f32 0.0, %v106
  %v108 = vpop.f32.mrb[0].mxu0
  %v109 = vadd.f32 0.0, %v108
  %110 = vdwg.mxu0
  %v113 = vcombine.low %v107, %v109
  %v115 = vadd.f32 %v18, %v113
  %v116 = vxor.u32 %v115, 2147483648
  %v117 = vmul.f32 %v116, 1.442695
  %v118 = vpow.pop %v117
  %v119 = vadd.f32 %v118, 1.0
  %v120 = vrcp.pop %v119
  %v121 = vmul.f32 1.0, %v120
  %v123 = vrot.slane %v115, 4
  %v125 = vtanh.pop %v123
  %v126 = vld [vmem:[#allocation3] sm:$0xf]
  %128 = vrot.lane.b32.xlu0 %v126, 64
  %v129 = vpop.permute.xlu0 %128
  %v131 = vmul.f32 %v121, %v129
  %v132 = vmul.f32 %v121, %v125
  %134 = vrot.lane.b32.xlu0 %v132, 64
  %v135 = vpop.permute.xlu0 %134
  %v137 = vadd.f32 %v131, %v135
  %v138 = vtanh.pop %v137
  %140 = vrot.lane.b32.xlu0 %v121, 64
  %v141 = vpop.permute.xlu0 %140
  %v142 = vrot.slane %v141, 4
  %145 = vrot.lane.b32.xlu0 %v138, 64
  %v146 = vpop.permute.xlu0 %145
  %v148 = vmul.f32 %v142, %v146
  %150 = vrot.lane.b32.xlu0 %v137, 64
  %v151 = vpop.permute.xlu0 %150
  %vm153 = vcmask 519168
  %154 = vst.msk [vmem:[#allocation3] sm:$0xf] %vm153, %v151
  %155 = vst.msk [vmem:[#allocation2] sm:$0xf] %vm153, %v148
  %156 = vst.msk [vmem:[%s2] sm:$0xf] %vm153, %v148
  %s157 = scalar_lea.vmem %s0, 8
  %v158 = vld [vmem:[%s157] sm:$0xff]
  %v159 = vld [vmem:[#allocation2] sm:$0xf]
  %v160 = vld [vmem:[%s1] sm:$0xff]
  %v161 = vld [vmem:[%s1 + $0x8] sm:$0xff]
  %v162 = vld [vmem:[%s1 + $0x10] sm:$0xff]
  %v163 = vld [vmem:[%s1 + $0x18] sm:$0xff]
  %v164 = vld [vmem:[%s1 + $0x20] sm:$0xff]
  %v165 = vld [vmem:[%s1 + $0x28] sm:$0xff]
  %v166 = vld [vmem:[%s1 + $0x30] sm:$0xff]
  %v167 = vld [vmem:[%s1 + $0x38] sm:$0xff]
  %v168 = vld [vmem:[%s1 + $0x40] sm:$0xff]
  %v169 = vld [vmem:[%s1 + $0x48] sm:$0xff]
  %v170 = vld [vmem:[%s1 + $0x50] sm:$0xff]
  %v171 = vld [vmem:[%s1 + $0x58] sm:$0xff]
  %v172 = vld [vmem:[%s1 + $0x60] sm:$0xff]
  %v173 = vld [vmem:[%s1 + $0x68] sm:$0xff]
  %v174 = vld [vmem:[%s1 + $0x70] sm:$0xff]
  %v175 = vld [vmem:[%s1 + $0x78] sm:$0xff]
  %v177 = vsel %vm36, %v159, 0
  %179 = vmatprep.subr.mxu0 %v161
  %180 = vmatpush1.msra.mxu0 %v160
  %181 = vmatprep.subr.mxu0 %v163
  %182 = vmatpush1.msra.mxu0 %v162
  %183 = vmatprep.subr.mxu0 %v165
  %184 = vmatpush1.msra.mxu0 %v164
  %185 = vmatprep.subr.mxu0 %v167
  %186 = vmatpush1.msra.mxu0 %v166
  %187 = vmatprep.subr.mxu0 %v169
  %188 = vmatpush1.msra.mxu0 %v168
  %189 = vmatprep.subr.mxu0 %v171
  %190 = vmatpush1.msra.mxu0 %v170
  %191 = vmatprep.subr.mxu0 %v173
  %192 = vmatpush1.msra.mxu0 %v172
  %193 = vmatprep.subr.mxu0 %v175
  %194 = vmatpush1.msra.mxu0 %v174
  %195 = vmatprep.subr.mxu0 0.0
  %196 = vmatpush1.msra.mxu0 0.0
  %197 = vmatprep.subr.mxu0 0.0
  %198 = vmatpush1.msra.mxu0 0.0
  %199 = vmatprep.subr.mxu0 0.0
  %200 = vmatpush1.msra.mxu0 0.0
  %201 = vmatprep.subr.mxu0 0.0
  %202 = vmatpush1.msra.mxu0 0.0
  %203 = vmatprep.subr.mxu0 0.0
  %204 = vmatpush1.msra.mxu0 0.0
  %205 = vmatprep.subr.mxu0 0.0
  %206 = vmatpush1.msra.mxu0 0.0
  %207 = vmatprep.subr.mxu0 0.0
  %208 = vmatpush1.msra.mxu0 0.0
  %209 = vmatprep.subr.mxu0 0.0
  %210 = vmatpush1.msra.mxu0 0.0
  %211 = vmatprep.subr.mxu0 0.0
  %212 = vmatpush1.msra.mxu0 0.0
  %213 = vmatprep.subr.mxu0 0.0
  %214 = vmatpush1.msra.mxu0 0.0
  %215 = vmatprep.subr.mxu0 0.0
  %216 = vmatpush1.msra.mxu0 0.0
  %217 = vmatprep.subr.mxu0 0.0
  %218 = vmatpush1.msra.mxu0 0.0
  %219 = vmatprep.subr.mxu0 0.0
  %220 = vmatpush1.msra.mxu0 0.0
  %221 = vmatprep.subr.mxu0 0.0
  %222 = vmatpush1.msra.mxu0 0.0
  %223 = vmatprep.subr.mxu0 0.0
  %224 = vmatpush1.msra.mxu0 0.0
  %225 = vmatprep.subr.mxu0 0.0
  %226 = vmatpush1.msra.mxu0 0.0
  %227 = vmatprep.subr.mxu0 0.0
  %228 = vmatpush1.msra.mxu0 0.0
  %229 = vmatprep.subr.mxu0 0.0
  %230 = vmatpush1.msra.mxu0 0.0
  %231 = vmatprep.subr.mxu0 0.0
  %232 = vmatpush1.msra.mxu0 0.0
  %233 = vmatprep.subr.mxu0 0.0
  %234 = vmatpush1.msra.mxu0 0.0
  %235 = vmatprep.subr.mxu0 0.0
  %236 = vmatpush1.msra.mxu0 0.0
  %237 = vmatprep.subr.mxu0 0.0
  %238 = vmatpush1.msra.mxu0 0.0
  %239 = vmatprep.subr.mxu0 0.0
  %240 = vmatpush1.msra.mxu0 0.0
  %241 = vmatprep.subr.mxu0 0.0
  %242 = vmatpush1.msra.mxu0 0.0
  %243 = vmatprep.mubr.f32.mxu0 0.0
  %244 = vmatmul.mubr.f32.gmra.mrb[0].mxu0 %v177
  %v245 = vpop.f32.mrb[0].mxu0
  %v246 = vadd.f32 0.0, %v245
  %v247 = vpop.f32.mrb[0].mxu0
  %v248 = vadd.f32 0.0, %v247
  %249 = vdwg.mxu0
  %v252 = vcombine.low %v246, %v248
  %v254 = vadd.f32 %v158, %v252
  %v255 = vxor.u32 %v254, 2147483648
  %v256 = vmul.f32 %v255, 1.442695
  %v257 = vpow.pop %v256
  %v258 = vadd.f32 %v257, 1.0
  %v259 = vrcp.pop %v258
  %v260 = vmul.f32 1.0, %v259
  %v262 = vrot.slane %v254, 4
  %v264 = vtanh.pop %v262
  %v265 = vld [vmem:[#allocation3] sm:$0xf]
  %267 = vrot.lane.b32.xlu0 %v265, 64
  %v268 = vpop.permute.xlu0 %267
  %v270 = vmul.f32 %v260, %v268
  %v271 = vmul.f32 %v260, %v264
  %273 = vrot.lane.b32.xlu0 %v271, 64
  %v274 = vpop.permute.xlu0 %273
  %v276 = vadd.f32 %v270, %v274
  %v277 = vtanh.pop %v276
  %279 = vrot.lane.b32.xlu0 %v260, 64
  %v280 = vpop.permute.xlu0 %279
  %v281 = vrot.slane %v280, 4
  %284 = vrot.lane.b32.xlu0 %v277, 64
  %v285 = vpop.permute.xlu0 %284
  %v287 = vmul.f32 %v281, %v285
  %289 = vrot.lane.b32.xlu0 %v276, 64
  %v290 = vpop.permute.xlu0 %289
  %292 = vst.msk [vmem:[#allocation3] sm:$0xf] %vm153, %v290
  %293 = vst.msk [vmem:[#allocation2] sm:$0xf] %vm153, %v287
  %s294 = scalar_lea.vmem %s2, 4
  %295 = vst.msk [vmem:[%s294] sm:$0xf] %vm153, %v287
  %s296 = scalar_lea.vmem %s0, 16
  %v297 = vld [vmem:[%s296] sm:$0xff]
  %v298 = vld [vmem:[#allocation2] sm:$0xf]
  %v299 = vld [vmem:[%s1] sm:$0xff]
  %v300 = vld [vmem:[%s1 + $0x8] sm:$0xff]
  %v301 = vld [vmem:[%s1 + $0x10] sm:$0xff]
  %v302 = vld [vmem:[%s1 + $0x18] sm:$0xff]
  %v303 = vld [vmem:[%s1 + $0x20] sm:$0xff]
  %v304 = vld [vmem:[%s1 + $0x28] sm:$0xff]
  %v305 = vld [vmem:[%s1 + $0x30] sm:$0xff]
  %v306 = vld [vmem:[%s1 + $0x38] sm:$0xff]
  %v307 = vld [vmem:[%s1 + $0x40] sm:$0xff]
  %v308 = vld [vmem:[%s1 + $0x48] sm:$0xff]
  %v309 = vld [vmem:[%s1 + $0x50] sm:$0xff]
  %v310 = vld [vmem:[%s1 + $0x58] sm:$0xff]
  %v311 = vld [vmem:[%s1 + $0x60] sm:$0xff]
  %v312 = vld [vmem:[%s1 + $0x68] sm:$0xff]
  %v313 = vld [vmem:[%s1 + $0x70] sm:$0xff]
  %v314 = vld [vmem:[%s1 + $0x78] sm:$0xff]
  %v316 = vsel %vm36, %v298, 0
  %318 = vmatprep.subr.mxu0 %v300
  %319 = vmatpush1.msra.mxu0 %v299
  %320 = vmatprep.subr.mxu0 %v302
  %321 = vmatpush1.msra.mxu0 %v301
  %322 = vmatprep.subr.mxu0 %v304
  %323 = vmatpush1.msra.mxu0 %v303
  %324 = vmatprep.subr.mxu0 %v306
  %325 = vmatpush1.msra.mxu0 %v305
  %326 = vmatprep.subr.mxu0 %v308
  %327 = vmatpush1.msra.mxu0 %v307
  %328 = vmatprep.subr.mxu0 %v310
  %329 = vmatpush1.msra.mxu0 %v309
  %330 = vmatprep.subr.mxu0 %v312
  %331 = vmatpush1.msra.mxu0 %v311
  %332 = vmatprep.subr.mxu0 %v314
  %333 = vmatpush1.msra.mxu0 %v313
  %334 = vmatprep.subr.mxu0 0.0
  %335 = vmatpush1.msra.mxu0 0.0
  %336 = vmatprep.subr.mxu0 0.0
  %337 = vmatpush1.msra.mxu0 0.0
  %338 = vmatprep.subr.mxu0 0.0
  %339 = vmatpush1.msra.mxu0 0.0
  %340 = vmatprep.subr.mxu0 0.0
  %341 = vmatpush1.msra.mxu0 0.0
  %342 = vmatprep.subr.mxu0 0.0
  %343 = vmatpush1.msra.mxu0 0.0
  %344 = vmatprep.subr.mxu0 0.0
  %345 = vmatpush1.msra.mxu0 0.0
  %346 = vmatprep.subr.mxu0 0.0
  %347 = vmatpush1.msra.mxu0 0.0
  %348 = vmatprep.subr.mxu0 0.0
  %349 = vmatpush1.msra.mxu0 0.0
  %350 = vmatprep.subr.mxu0 0.0
  %351 = vmatpush1.msra.mxu0 0.0
  %352 = vmatprep.subr.mxu0 0.0
  %353 = vmatpush1.msra.mxu0 0.0
  %354 = vmatprep.subr.mxu0 0.0
  %355 = vmatpush1.msra.mxu0 0.0
  %356 = vmatprep.subr.mxu0 0.0
  %357 = vmatpush1.msra.mxu0 0.0
  %358 = vmatprep.subr.mxu0 0.0
  %359 = vmatpush1.msra.mxu0 0.0
  %360 = vmatprep.subr.mxu0 0.0
  %361 = vmatpush1.msra.mxu0 0.0
  %362 = vmatprep.subr.mxu0 0.0
  %363 = vmatpush1.msra.mxu0 0.0
  %364 = vmatprep.subr.mxu0 0.0
  %365 = vmatpush1.msra.mxu0 0.0
  %366 = vmatprep.subr.mxu0 0.0
  %367 = vmatpush1.msra.mxu0 0.0
  %368 = vmatprep.subr.mxu0 0.0
  %369 = vmatpush1.msra.mxu0 0.0
  %370 = vmatprep.subr.mxu0 0.0
  %371 = vmatpush1.msra.mxu0 0.0
  %372 = vmatprep.subr.mxu0 0.0
  %373 = vmatpush1.msra.mxu0 0.0
  %374 = vmatprep.subr.mxu0 0.0
  %375 = vmatpush1.msra.mxu0 0.0
  %376 = vmatprep.subr.mxu0 0.0
  %377 = vmatpush1.msra.mxu0 0.0
  %378 = vmatprep.subr.mxu0 0.0
  %379 = vmatpush1.msra.mxu0 0.0
  %380 = vmatprep.subr.mxu0 0.0
  %381 = vmatpush1.msra.mxu0 0.0
  %382 = vmatprep.mubr.f32.mxu0 0.0
  %383 = vmatmul.mubr.f32.gmra.mrb[0].mxu0 %v316
  %v384 = vpop.f32.mrb[0].mxu0
  %v385 = vadd.f32 0.0, %v384
  %v386 = vpop.f32.mrb[0].mxu0
  %v387 = vadd.f32 0.0, %v386
  %388 = vdwg.mxu0
  %v391 = vcombine.low %v385, %v387
  %v393 = vadd.f32 %v297, %v391
  %v394 = vxor.u32 %v393, 2147483648
  %v395 = vmul.f32 %v394, 1.442695
  %v396 = vpow.pop %v395
  %v397 = vadd.f32 %v396, 1.0
  %v398 = vrcp.pop %v397
  %v399 = vmul.f32 1.0, %v398
  %v401 = vrot.slane %v393, 4
  %v403 = vtanh.pop %v401
  %v404 = vld [vmem:[#allocation3] sm:$0xf]
  %406 = vrot.lane.b32.xlu0 %v404, 64
  %v407 = vpop.permute.xlu0 %406
  %v409 = vmul.f32 %v399, %v407
  %v410 = vmul.f32 %v399, %v403
  %412 = vrot.lane.b32.xlu0 %v410, 64
  %v413 = vpop.permute.xlu0 %412
  %v415 = vadd.f32 %v409, %v413
  %v416 = vtanh.pop %v415
  %418 = vrot.lane.b32.xlu0 %v399, 64
  %v419 = vpop.permute.xlu0 %418
  %v420 = vrot.slane %v419, 4
  %423 = vrot.lane.b32.xlu0 %v416, 64
  %v424 = vpop.permute.xlu0 %423
  %v426 = vmul.f32 %v420, %v424
  %428 = vrot.lane.b32.xlu0 %v415, 64
  %v429 = vpop.permute.xlu0 %428
  %431 = vst.msk [vmem:[#allocation3] sm:$0xf] %vm153, %v429
  %432 = vst.msk [vmem:[#allocation2] sm:$0xf] %vm153, %v426
  %s433 = scalar_lea.vmem %s2, 8
  %434 = vst.msk [vmem:[%s433] sm:$0xf] %vm153, %v426
  %s435 = scalar_lea.vmem %s0, 24
  %v436 = vld [vmem:[%s435] sm:$0xff]
  %v437 = vld [vmem:[#allocation2] sm:$0xf]
  %v438 = vld [vmem:[%s1] sm:$0xff]
  %v439 = vld [vmem:[%s1 + $0x8] sm:$0xff]
  %v440 = vld [vmem:[%s1 + $0x10] sm:$0xff]
  %v441 = vld [vmem:[%s1 + $0x18] sm:$0xff]
  %v442 = vld [vmem:[%s1 + $0x20] sm:$0xff]
  %v443 = vld [vmem:[%s1 + $0x28] sm:$0xff]
  %v444 = vld [vmem:[%s1 + $0x30] sm:$0xff]
  %v445 = vld [vmem:[%s1 + $0x38] sm:$0xff]
  %v446 = vld [vmem:[%s1 + $0x40] sm:$0xff]
  %v447 = vld [vmem:[%s1 + $0x48] sm:$0xff]
  %v448 = vld [vmem:[%s1 + $0x50] sm:$0xff]
  %v449 = vld [vmem:[%s1 + $0x58] sm:$0xff]
  %v450 = vld [vmem:[%s1 + $0x60] sm:$0xff]
  %v451 = vld [vmem:[%s1 + $0x68] sm:$0xff]
  %v452 = vld [vmem:[%s1 + $0x70] sm:$0xff]
  %v453 = vld [vmem:[%s1 + $0x78] sm:$0xff]
  %v455 = vsel %vm36, %v437, 0
  %457 = vmatprep.subr.mxu0 %v439
  %458 = vmatpush1.msra.mxu0 %v438
  %459 = vmatprep.subr.mxu0 %v441
  %460 = vmatpush1.msra.mxu0 %v440
  %461 = vmatprep.subr.mxu0 %v443
  %462 = vmatpush1.msra.mxu0 %v442
  %463 = vmatprep.subr.mxu0 %v445
  %464 = vmatpush1.msra.mxu0 %v444
  %465 = vmatprep.subr.mxu0 %v447
  %466 = vmatpush1.msra.mxu0 %v446
  %467 = vmatprep.subr.mxu0 %v449
  %468 = vmatpush1.msra.mxu0 %v448
  %469 = vmatprep.subr.mxu0 %v451
  %470 = vmatpush1.msra.mxu0 %v450
  %471 = vmatprep.subr.mxu0 %v453
  %472 = vmatpush1.msra.mxu0 %v452
  %473 = vmatprep.subr.mxu0 0.0
  %474 = vmatpush1.msra.mxu0 0.0
  %475 = vmatprep.subr.mxu0 0.0
  %476 = vmatpush1.msra.mxu0 0.0
  %477 = vmatprep.subr.mxu0 0.0
  %478 = vmatpush1.msra.mxu0 0.0
  %479 = vmatprep.subr.mxu0 0.0
  %480 = vmatpush1.msra.mxu0 0.0
  %481 = vmatprep.subr.mxu0 0.0
  %482 = vmatpush1.msra.mxu0 0.0
  %483 = vmatprep.subr.mxu0 0.0
  %484 = vmatpush1.msra.mxu0 0.0
  %485 = vmatprep.subr.mxu0 0.0
  %486 = vmatpush1.msra.mxu0 0.0
  %487 = vmatprep.subr.mxu0 0.0
  %488 = vmatpush1.msra.mxu0 0.0
  %489 = vmatprep.subr.mxu0 0.0
  %490 = vmatpush1.msra.mxu0 0.0
  %491 = vmatprep.subr.mxu0 0.0
  %492 = vmatpush1.msra.mxu0 0.0
  %493 = vmatprep.subr.mxu0 0.0
  %494 = vmatpush1.msra.mxu0 0.0
  %495 = vmatprep.subr.mxu0 0.0
  %496 = vmatpush1.msra.mxu0 0.0
  %497 = vmatprep.subr.mxu0 0.0
  %498 = vmatpush1.msra.mxu0 0.0
  %499 = vmatprep.subr.mxu0 0.0
  %500 = vmatpush1.msra.mxu0 0.0
  %501 = vmatprep.subr.mxu0 0.0
  %502 = vmatpush1.msra.mxu0 0.0
  %503 = vmatprep.subr.mxu0 0.0
  %504 = vmatpush1.msra.mxu0 0.0
  %505 = vmatprep.subr.mxu0 0.0
  %506 = vmatpush1.msra.mxu0 0.0
  %507 = vmatprep.subr.mxu0 0.0
  %508 = vmatpush1.msra.mxu0 0.0
  %509 = vmatprep.subr.mxu0 0.0
  %510 = vmatpush1.msra.mxu0 0.0
  %511 = vmatprep.subr.mxu0 0.0
  %512 = vmatpush1.msra.mxu0 0.0
  %513 = vmatprep.subr.mxu0 0.0
  %514 = vmatpush1.msra.mxu0 0.0
  %515 = vmatprep.subr.mxu0 0.0
  %516 = vmatpush1.msra.mxu0 0.0
  %517 = vmatprep.subr.mxu0 0.0
  %518 = vmatpush1.msra.mxu0 0.0
  %519 = vmatprep.subr.mxu0 0.0
  %520 = vmatpush1.msra.mxu0 0.0
  %521 = vmatprep.mubr.f32.mxu0 0.0
  %522 = vmatmul.mubr.f32.gmra.mrb[0].mxu0 %v455
  %v523 = vpop.f32.mrb[0].mxu0
  %v524 = vadd.f32 0.0, %v523
  %v525 = vpop.f32.mrb[0].mxu0
  %v526 = vadd.f32 0.0, %v525
  %527 = vdwg.mxu0
  %v530 = vcombine.low %v524, %v526
  %v532 = vadd.f32 %v436, %v530
  %v533 = vxor.u32 %v532, 2147483648
  %v534 = vmul.f32 %v533, 1.442695
  %v535 = vpow.pop %v534
  %v536 = vadd.f32 %v535, 1.0
  %v537 = vrcp.pop %v536
  %v538 = vmul.f32 1.0, %v537
  %v540 = vrot.slane %v532, 4
  %v542 = vtanh.pop %v540
  %v543 = vld [vmem:[#allocation3] sm:$0xf]
  %545 = vrot.lane.b32.xlu0 %v543, 64
  %v546 = vpop.permute.xlu0 %545
  %v548 = vmul.f32 %v538, %v546
  %v549 = vmul.f32 %v538, %v542
  %551 = vrot.lane.b32.xlu0 %v549, 64
  %v552 = vpop.permute.xlu0 %551
  %v554 = vadd.f32 %v548, %v552
  %v555 = vtanh.pop %v554
  %557 = vrot.lane.b32.xlu0 %v538, 64
  %v558 = vpop.permute.xlu0 %557
  %v559 = vrot.slane %v558, 4
  %562 = vrot.lane.b32.xlu0 %v555, 64
  %v563 = vpop.permute.xlu0 %562
  %v565 = vmul.f32 %v559, %v563
  %567 = vrot.lane.b32.xlu0 %v554, 64
  %v568 = vpop.permute.xlu0 %567
  %570 = vst.msk [vmem:[#allocation3] sm:$0xf] %vm153, %v568
  %571 = vst.msk [vmem:[#allocation2] sm:$0xf] %vm153, %v565
  %s572 = scalar_lea.vmem %s2, 12
  %573 = vst.msk [vmem:[%s572] sm:$0xf] %vm153, %v565
  %s574 = scalar_lea.vmem %s0, 32
  %v575 = vld [vmem:[%s574] sm:$0xff]
  %v576 = vld [vmem:[#allocation2] sm:$0xf]
  %v577 = vld [vmem:[%s1] sm:$0xff]
  %v578 = vld [vmem:[%s1 + $0x8] sm:$0xff]
  %v579 = vld [vmem:[%s1 + $0x10] sm:$0xff]
  %v580 = vld [vmem:[%s1 + $0x18] sm:$0xff]
  %v581 = vld [vmem:[%s1 + $0x20] sm:$0xff]
  %v582 = vld [vmem:[%s1 + $0x28] sm:$0xff]
  %v583 = vld [vmem:[%s1 + $0x30] sm:$0xff]
  %v584 = vld [vmem:[%s1 + $0x38] sm:$0xff]
  %v585 = vld [vmem:[%s1 + $0x40] sm:$0xff]
  %v586 = vld [vmem:[%s1 + $0x48] sm:$0xff]
  %v587 = vld [vmem:[%s1 + $0x50] sm:$0xff]
  %v588 = vld [vmem:[%s1 + $0x58] sm:$0xff]
  %v589 = vld [vmem:[%s1 + $0x60] sm:$0xff]
  %v590 = vld [vmem:[%s1 + $0x68] sm:$0xff]
  %v591 = vld [vmem:[%s1 + $0x70] sm:$0xff]
  %v592 = vld [vmem:[%s1 + $0x78] sm:$0xff]
  %v594 = vsel %vm36, %v576, 0
  %596 = vmatprep.subr.mxu0 %v578
  %597 = vmatpush1.msra.mxu0 %v577
  %598 = vmatprep.subr.mxu0 %v580
  %599 = vmatpush1.msra.mxu0 %v579
  %600 = vmatprep.subr.mxu0 %v582
  %601 = vmatpush1.msra.mxu0 %v581
  %602 = vmatprep.subr.mxu0 %v584
  %603 = vmatpush1.msra.mxu0 %v583
  %604 = vmatprep.subr.mxu0 %v586
  %605 = vmatpush1.msra.mxu0 %v585
  %606 = vmatprep.subr.mxu0 %v588
  %607 = vmatpush1.msra.mxu0 %v587
  %608 = vmatprep.subr.mxu0 %v590
  %609 = vmatpush1.msra.mxu0 %v589
  %610 = vmatprep.subr.mxu0 %v592
  %611 = vmatpush1.msra.mxu0 %v591
  %612 = vmatprep.subr.mxu0 0.0
  %613 = vmatpush1.msra.mxu0 0.0
  %614 = vmatprep.subr.mxu0 0.0
  %615 = vmatpush1.msra.mxu0 0.0
  %616 = vmatprep.subr.mxu0 0.0
  %617 = vmatpush1.msra.mxu0 0.0
  %618 = vmatprep.subr.mxu0 0.0
  %619 = vmatpush1.msra.mxu0 0.0
  %620 = vmatprep.subr.mxu0 0.0
  %621 = vmatpush1.msra.mxu0 0.0
  %622 = vmatprep.subr.mxu0 0.0
  %623 = vmatpush1.msra.mxu0 0.0
  %624 = vmatprep.subr.mxu0 0.0
  %625 = vmatpush1.msra.mxu0 0.0
  %626 = vmatprep.subr.mxu0 0.0
  %627 = vmatpush1.msra.mxu0 0.0
  %628 = vmatprep.subr.mxu0 0.0
  %629 = vmatpush1.msra.mxu0 0.0
  %630 = vmatprep.subr.mxu0 0.0
  %631 = vmatpush1.msra.mxu0 0.0
  %632 = vmatprep.subr.mxu0 0.0
  %633 = vmatpush1.msra.mxu0 0.0
  %634 = vmatprep.subr.mxu0 0.0
  %635 = vmatpush1.msra.mxu0 0.0
  %636 = vmatprep.subr.mxu0 0.0
  %637 = vmatpush1.msra.mxu0 0.0
  %638 = vmatprep.subr.mxu0 0.0
  %639 = vmatpush1.msra.mxu0 0.0
  %640 = vmatprep.subr.mxu0 0.0
  %641 = vmatpush1.msra.mxu0 0.0
  %642 = vmatprep.subr.mxu0 0.0
  %643 = vmatpush1.msra.mxu0 0.0
  %644 = vmatprep.subr.mxu0 0.0
  %645 = vmatpush1.msra.mxu0 0.0
  %646 = vmatprep.subr.mxu0 0.0
  %647 = vmatpush1.msra.mxu0 0.0
  %648 = vmatprep.subr.mxu0 0.0
  %649 = vmatpush1.msra.mxu0 0.0
  %650 = vmatprep.subr.mxu0 0.0
  %651 = vmatpush1.msra.mxu0 0.0
  %652 = vmatprep.subr.mxu0 0.0
  %653 = vmatpush1.msra.mxu0 0.0
  %654 = vmatprep.subr.mxu0 0.0
  %655 = vmatpush1.msra.mxu0 0.0
  %656 = vmatprep.subr.mxu0 0.0
  %657 = vmatpush1.msra.mxu0 0.0
  %658 = vmatprep.subr.mxu0 0.0
  %659 = vmatpush1.msra.mxu0 0.0
  %660 = vmatprep.mubr.f32.mxu0 0.0
  %661 = vmatmul.mubr.f32.gmra.mrb[0].mxu0 %v594
  %v662 = vpop.f32.mrb[0].mxu0
  %v663 = vadd.f32 0.0, %v662
  %v664 = vpop.f32.mrb[0].mxu0
  %v665 = vadd.f32 0.0, %v664
  %666 = vdwg.mxu0
  %v669 = vcombine.low %v663, %v665
  %v671 = vadd.f32 %v575, %v669
  %v672 = vxor.u32 %v671, 2147483648
  %v673 = vmul.f32 %v672, 1.442695
  %v674 = vpow.pop %v673
  %v675 = vadd.f32 %v674, 1.0
  %v676 = vrcp.pop %v675
  %v677 = vmul.f32 1.0, %v676
  %v679 = vrot.slane %v671, 4
  %v681 = vtanh.pop %v679
  %v682 = vld [vmem:[#allocation3] sm:$0xf]
  %684 = vrot.lane.b32.xlu0 %v682, 64
  %v685 = vpop.permute.xlu0 %684
  %v687 = vmul.f32 %v677, %v685
  %v688 = vmul.f32 %v677, %v681
  %690 = vrot.lane.b32.xlu0 %v688, 64
  %v691 = vpop.permute.xlu0 %690
  %v693 = vadd.f32 %v687, %v691
  %v694 = vtanh.pop %v693
  %696 = vrot.lane.b32.xlu0 %v677, 64
  %v697 = vpop.permute.xlu0 %696
  %v698 = vrot.slane %v697, 4
  %701 = vrot.lane.b32.xlu0 %v694, 64
  %v702 = vpop.permute.xlu0 %701
  %v704 = vmul.f32 %v698, %v702
  %706 = vrot.lane.b32.xlu0 %v693, 64
  %v707 = vpop.permute.xlu0 %706
  %709 = vst.msk [vmem:[#allocation3] sm:$0xf] %vm153, %v707
  %710 = vst.msk [vmem:[#allocation2] sm:$0xf] %vm153, %v704
  %s711 = scalar_lea.vmem %s2, 16
  %712 = vst.msk [vmem:[%s711] sm:$0xf] %vm153, %v704
  %s713 = scalar_lea.vmem %s0, 40
  %v714 = vld [vmem:[%s713] sm:$0xff]
  %v715 = vld [vmem:[#allocation2] sm:$0xf]
  %v716 = vld [vmem:[%s1] sm:$0xff]
  %v717 = vld [vmem:[%s1 + $0x8] sm:$0xff]
  %v718 = vld [vmem:[%s1 + $0x10] sm:$0xff]
  %v719 = vld [vmem:[%s1 + $0x18] sm:$0xff]
  %v720 = vld [vmem:[%s1 + $0x20] sm:$0xff]
  %v721 = vld [vmem:[%s1 + $0x28] sm:$0xff]
  %v722 = vld [vmem:[%s1 + $0x30] sm:$0xff]
  %v723 = vld [vmem:[%s1 + $0x38] sm:$0xff]
  %v724 = vld [vmem:[%s1 + $0x40] sm:$0xff]
  %v725 = vld [vmem:[%s1 + $0x48] sm:$0xff]
  %v726 = vld [vmem:[%s1 + $0x50] sm:$0xff]
  %v727 = vld [vmem:[%s1 + $0x58] sm:$0xff]
  %v728 = vld [vmem:[%s1 + $0x60] sm:$0xff]
  %v729 = vld [vmem:[%s1 + $0x68] sm:$0xff]
  %v730 = vld [vmem:[%s1 + $0x70] sm:$0xff]
  %v731 = vld [vmem:[%s1 + $0x78] sm:$0xff]
  %v733 = vsel %vm36, %v715, 0
  %735 = vmatprep.subr.mxu0 %v717
  %736 = vmatpush1.msra.mxu0 %v716
  %737 = vmatprep.subr.mxu0 %v719
  %738 = vmatpush1.msra.mxu0 %v718
  %739 = vmatprep.subr.mxu0 %v721
  %740 = vmatpush1.msra.mxu0 %v720
  %741 = vmatprep.subr.mxu0 %v723
  %742 = vmatpush1.msra.mxu0 %v722
  %743 = vmatprep.subr.mxu0 %v725
  %744 = vmatpush1.msra.mxu0 %v724
  %745 = vmatprep.subr.mxu0 %v727
  %746 = vmatpush1.msra.mxu0 %v726
  %747 = vmatprep.subr.mxu0 %v729
  %748 = vmatpush1.msra.mxu0 %v728
  %749 = vmatprep.subr.mxu0 %v731
  %750 = vmatpush1.msra.mxu0 %v730
  %751 = vmatprep.subr.mxu0 0.0
  %752 = vmatpush1.msra.mxu0 0.0
  %753 = vmatprep.subr.mxu0 0.0
  %754 = vmatpush1.msra.mxu0 0.0
  %755 = vmatprep.subr.mxu0 0.0
  %756 = vmatpush1.msra.mxu0 0.0
  %757 = vmatprep.subr.mxu0 0.0
  %758 = vmatpush1.msra.mxu0 0.0
  %759 = vmatprep.subr.mxu0 0.0
  %760 = vmatpush1.msra.mxu0 0.0
  %761 = vmatprep.subr.mxu0 0.0
  %762 = vmatpush1.msra.mxu0 0.0
  %763 = vmatprep.subr.mxu0 0.0
  %764 = vmatpush1.msra.mxu0 0.0
  %765 = vmatprep.subr.mxu0 0.0
  %766 = vmatpush1.msra.mxu0 0.0
  %767 = vmatprep.subr.mxu0 0.0
  %768 = vmatpush1.msra.mxu0 0.0
  %769 = vmatprep.subr.mxu0 0.0
  %770 = vmatpush1.msra.mxu0 0.0
  %771 = vmatprep.subr.mxu0 0.0
  %772 = vmatpush1.msra.mxu0 0.0
  %773 = vmatprep.subr.mxu0 0.0
  %774 = vmatpush1.msra.mxu0 0.0
  %775 = vmatprep.subr.mxu0 0.0
  %776 = vmatpush1.msra.mxu0 0.0
  %777 = vmatprep.subr.mxu0 0.0
  %778 = vmatpush1.msra.mxu0 0.0
  %779 = vmatprep.subr.mxu0 0.0
  %780 = vmatpush1.msra.mxu0 0.0
  %781 = vmatprep.subr.mxu0 0.0
  %782 = vmatpush1.msra.mxu0 0.0
  %783 = vmatprep.subr.mxu0 0.0
  %784 = vmatpush1.msra.mxu0 0.0
  %785 = vmatprep.subr.mxu0 0.0
  %786 = vmatpush1.msra.mxu0 0.0
  %787 = vmatprep.subr.mxu0 0.0
  %788 = vmatpush1.msra.mxu0 0.0
  %789 = vmatprep.subr.mxu0 0.0
  %790 = vmatpush1.msra.mxu0 0.0
  %791 = vmatprep.subr.mxu0 0.0
  %792 = vmatpush1.msra.mxu0 0.0
  %793 = vmatprep.subr.mxu0 0.0
  %794 = vmatpush1.msra.mxu0 0.0
  %795 = vmatprep.subr.mxu0 0.0
  %796 = vmatpush1.msra.mxu0 0.0
  %797 = vmatprep.subr.mxu0 0.0
  %798 = vmatpush1.msra.mxu0 0.0
  %799 = vmatprep.mubr.f32.mxu0 0.0
  %800 = vmatmul.mubr.f32.gmra.mrb[0].mxu0 %v733
  %v801 = vpop.f32.mrb[0].mxu0
  %v802 = vadd.f32 0.0, %v801
  %v803 = vpop.f32.mrb[0].mxu0
  %v804 = vadd.f32 0.0, %v803
  %805 = vdwg.mxu0
  %v808 = vcombine.low %v802, %v804
  %v810 = vadd.f32 %v714, %v808
  %v811 = vxor.u32 %v810, 2147483648
  %v812 = vmul.f32 %v811, 1.442695
  %v813 = vpow.pop %v812
  %v814 = vadd.f32 %v813, 1.0
  %v815 = vrcp.pop %v814
  %v816 = vmul.f32 1.0, %v815
  %v818 = vrot.slane %v810, 4
  %v820 = vtanh.pop %v818
  %v821 = vld [vmem:[#allocation3] sm:$0xf]
  %823 = vrot.lane.b32.xlu0 %v821, 64
  %v824 = vpop.permute.xlu0 %823
  %v826 = vmul.f32 %v816, %v824
  %v827 = vmul.f32 %v816, %v820
  %829 = vrot.lane.b32.xlu0 %v827, 64
  %v830 = vpop.permute.xlu0 %829
  %v832 = vadd.f32 %v826, %v830
  %v833 = vtanh.pop %v832
  %835 = vrot.lane.b32.xlu0 %v816, 64
  %v836 = vpop.permute.xlu0 %835
  %v837 = vrot.slane %v836, 4
  %840 = vrot.lane.b32.xlu0 %v833, 64
  %v841 = vpop.permute.xlu0 %840
  %v843 = vmul.f32 %v837, %v841
  %845 = vrot.lane.b32.xlu0 %v832, 64
  %v846 = vpop.permute.xlu0 %845
  %848 = vst.msk [vmem:[#allocation3] sm:$0xf] %vm153, %v846
  %849 = vst.msk [vmem:[#allocation2] sm:$0xf] %vm153, %v843
  %s850 = scalar_lea.vmem %s2, 20
  %851 = vst.msk [vmem:[%s850] sm:$0xf] %vm153, %v843
  %s852 = scalar_lea.vmem %s0, 48
  %v853 = vld [vmem:[%s852] sm:$0xff]
  %v854 = vld [vmem:[#allocation2] sm:$0xf]
  %v855 = vld [vmem:[%s1] sm:$0xff]
  %v856 = vld [vmem:[%s1 + $0x8] sm:$0xff]
  %v857 = vld [vmem:[%s1 + $0x10] sm:$0xff]
  %v858 = vld [vmem:[%s1 + $0x18] sm:$0xff]
  %v859 = vld [vmem:[%s1 + $0x20] sm:$0xff]
  %v860 = vld [vmem:[%s1 + $0x28] sm:$0xff]
  %v861 = vld [vmem:[%s1 + $0x30] sm:$0xff]
  %v862 = vld [vmem:[%s1 + $0x38] sm:$0xff]
  %v863 = vld [vmem:[%s1 + $0x40] sm:$0xff]
  %v864 = vld [vmem:[%s1 + $0x48] sm:$0xff]
  %v865 = vld [vmem:[%s1 + $0x50] sm:$0xff]
  %v866 = vld [vmem:[%s1 + $0x58] sm:$0xff]
  %v867 = vld [vmem:[%s1 + $0x60] sm:$0xff]
  %v868 = vld [vmem:[%s1 + $0x68] sm:$0xff]
  %v869 = vld [vmem:[%s1 + $0x70] sm:$0xff]
  %v870 = vld [vmem:[%s1 + $0x78] sm:$0xff]
  %v872 = vsel %vm36, %v854, 0
  %874 = vmatprep.subr.mxu0 %v856
  %875 = vmatpush1.msra.mxu0 %v855
  %876 = vmatprep.subr.mxu0 %v858
  %877 = vmatpush1.msra.mxu0 %v857
  %878 = vmatprep.subr.mxu0 %v860
  %879 = vmatpush1.msra.mxu0 %v859
  %880 = vmatprep.subr.mxu0 %v862
  %881 = vmatpush1.msra.mxu0 %v861
  %882 = vmatprep.subr.mxu0 %v864
  %883 = vmatpush1.msra.mxu0 %v863
  %884 = vmatprep.subr.mxu0 %v866
  %885 = vmatpush1.msra.mxu0 %v865
  %886 = vmatprep.subr.mxu0 %v868
  %887 = vmatpush1.msra.mxu0 %v867
  %888 = vmatprep.subr.mxu0 %v870
  %889 = vmatpush1.msra.mxu0 %v869
  %890 = vmatprep.subr.mxu0 0.0
  %891 = vmatpush1.msra.mxu0 0.0
  %892 = vmatprep.subr.mxu0 0.0
  %893 = vmatpush1.msra.mxu0 0.0
  %894 = vmatprep.subr.mxu0 0.0
  %895 = vmatpush1.msra.mxu0 0.0
  %896 = vmatprep.subr.mxu0 0.0
  %897 = vmatpush1.msra.mxu0 0.0
  %898 = vmatprep.subr.mxu0 0.0
  %899 = vmatpush1.msra.mxu0 0.0
  %900 = vmatprep.subr.mxu0 0.0
  %901 = vmatpush1.msra.mxu0 0.0
  %902 = vmatprep.subr.mxu0 0.0
  %903 = vmatpush1.msra.mxu0 0.0
  %904 = vmatprep.subr.mxu0 0.0
  %905 = vmatpush1.msra.mxu0 0.0
  %906 = vmatprep.subr.mxu0 0.0
  %907 = vmatpush1.msra.mxu0 0.0
  %908 = vmatprep.subr.mxu0 0.0
  %909 = vmatpush1.msra.mxu0 0.0
  %910 = vmatprep.subr.mxu0 0.0
  %911 = vmatpush1.msra.mxu0 0.0
  %912 = vmatprep.subr.mxu0 0.0
  %913 = vmatpush1.msra.mxu0 0.0
  %914 = vmatprep.subr.mxu0 0.0
  %915 = vmatpush1.msra.mxu0 0.0
  %916 = vmatprep.subr.mxu0 0.0
  %917 = vmatpush1.msra.mxu0 0.0
  %918 = vmatprep.subr.mxu0 0.0
  %919 = vmatpush1.msra.mxu0 0.0
  %920 = vmatprep.subr.mxu0 0.0
  %921 = vmatpush1.msra.mxu0 0.0
  %922 = vmatprep.subr.mxu0 0.0
  %923 = vmatpush1.msra.mxu0 0.0
  %924 = vmatprep.subr.mxu0 0.0
  %925 = vmatpush1.msra.mxu0 0.0
  %926 = vmatprep.subr.mxu0 0.0
  %927 = vmatpush1.msra.mxu0 0.0
  %928 = vmatprep.subr.mxu0 0.0
  %929 = vmatpush1.msra.mxu0 0.0
  %930 = vmatprep.subr.mxu0 0.0
  %931 = vmatpush1.msra.mxu0 0.0
  %932 = vmatprep.subr.mxu0 0.0
  %933 = vmatpush1.msra.mxu0 0.0
  %934 = vmatprep.subr.mxu0 0.0
  %935 = vmatpush1.msra.mxu0 0.0
  %936 = vmatprep.subr.mxu0 0.0
  %937 = vmatpush1.msra.mxu0 0.0
  %938 = vmatprep.mubr.f32.mxu0 0.0
  %939 = vmatmul.mubr.f32.gmra.mrb[0].mxu0 %v872
  %v940 = vpop.f32.mrb[0].mxu0
  %v941 = vadd.f32 0.0, %v940
  %v942 = vpop.f32.mrb[0].mxu0
  %v943 = vadd.f32 0.0, %v942
  %944 = vdwg.mxu0
  %v947 = vcombine.low %v941, %v943
  %v949 = vadd.f32 %v853, %v947
  %v950 = vxor.u32 %v949, 2147483648
  %v951 = vmul.f32 %v950, 1.442695
  %v952 = vpow.pop %v951
  %v953 = vadd.f32 %v952, 1.0
  %v954 = vrcp.pop %v953
  %v955 = vmul.f32 1.0, %v954
  %v957 = vrot.slane %v949, 4
  %v959 = vtanh.pop %v957
  %v960 = vld [vmem:[#allocation3] sm:$0xf]
  %962 = vrot.lane.b32.xlu0 %v960, 64
  %v963 = vpop.permute.xlu0 %962
  %v965 = vmul.f32 %v955, %v963
  %v966 = vmul.f32 %v955, %v959
  %968 = vrot.lane.b32.xlu0 %v966, 64
  %v969 = vpop.permute.xlu0 %968
  %v971 = vadd.f32 %v965, %v969
  %v972 = vtanh.pop %v971
  %974 = vrot.lane.b32.xlu0 %v955, 64
  %v975 = vpop.permute.xlu0 %974
  %v976 = vrot.slane %v975, 4
  %979 = vrot.lane.b32.xlu0 %v972, 64
  %v980 = vpop.permute.xlu0 %979
  %v982 = vmul.f32 %v976, %v980
  %984 = vrot.lane.b32.xlu0 %v971, 64
  %v985 = vpop.permute.xlu0 %984
  %987 = vst.msk [vmem:[#allocation3] sm:$0xf] %vm153, %v985
  %988 = vst.msk [vmem:[#allocation2] sm:$0xf] %vm153, %v982
  %s989 = scalar_lea.vmem %s2, 24
  %990 = vst.msk [vmem:[%s989] sm:$0xf] %vm153, %v982
  %s991 = scalar_lea.vmem %s0, 56
  %v992 = vld [vmem:[%s991] sm:$0xff]
  %v993 = vld [vmem:[#allocation2] sm:$0xf]
  %v994 = vld [vmem:[%s1] sm:$0xff]
  %v995 = vld [vmem:[%s1 + $0x8] sm:$0xff]
  %v996 = vld [vmem:[%s1 + $0x10] sm:$0xff]
  %v997 = vld [vmem:[%s1 + $0x18] sm:$0xff]
  %v998 = vld [vmem:[%s1 + $0x20] sm:$0xff]
  %v999 = vld [vmem:[%s1 + $0x28] sm:$0xff]
  %v1000 = vld [vmem:[%s1 + $0x30] sm:$0xff]
  %v1001 = vld [vmem:[%s1 + $0x38] sm:$0xff]
  %v1002 = vld [vmem:[%s1 + $0x40] sm:$0xff]
  %v1003 = vld [vmem:[%s1 + $0x48] sm:$0xff]
  %v1004 = vld [vmem:[%s1 + $0x50] sm:$0xff]
  %v1005 = vld [vmem:[%s1 + $0x58] sm:$0xff]
  %v1006 = vld [vmem:[%s1 + $0x60] sm:$0xff]
  %v1007 = vld [vmem:[%s1 + $0x68] sm:$0xff]
  %v1008 = vld [vmem:[%s1 + $0x70] sm:$0xff]
  %v1009 = vld [vmem:[%s1 + $0x78] sm:$0xff]
  %v1011 = vsel %vm36, %v993, 0
  %1013 = vmatprep.subr.mxu0 %v995
  %1014 = vmatpush1.msra.mxu0 %v994
  %1015 = vmatprep.subr.mxu0 %v997
  %1016 = vmatpush1.msra.mxu0 %v996
  %1017 = vmatprep.subr.mxu0 %v999
  %1018 = vmatpush1.msra.mxu0 %v998
  %1019 = vmatprep.subr.mxu0 %v1001
  %1020 = vmatpush1.msra.mxu0 %v1000
  %1021 = vmatprep.subr.mxu0 %v1003
  %1022 = vmatpush1.msra.mxu0 %v1002
  %1023 = vmatprep.subr.mxu0 %v1005
  %1024 = vmatpush1.msra.mxu0 %v1004
  %1025 = vmatprep.subr.mxu0 %v1007
  %1026 = vmatpush1.msra.mxu0 %v1006
  %1027 = vmatprep.subr.mxu0 %v1009
  %1028 = vmatpush1.msra.mxu0 %v1008
  %1029 = vmatprep.subr.mxu0 0.0
  %1030 = vmatpush1.msra.mxu0 0.0
  %1031 = vmatprep.subr.mxu0 0.0
  %1032 = vmatpush1.msra.mxu0 0.0
  %1033 = vmatprep.subr.mxu0 0.0
  %1034 = vmatpush1.msra.mxu0 0.0
  %1035 = vmatprep.subr.mxu0 0.0
  %1036 = vmatpush1.msra.mxu0 0.0
  %1037 = vmatprep.subr.mxu0 0.0
  %1038 = vmatpush1.msra.mxu0 0.0
  %1039 = vmatprep.subr.mxu0 0.0
  %1040 = vmatpush1.msra.mxu0 0.0
  %1041 = vmatprep.subr.mxu0 0.0
  %1042 = vmatpush1.msra.mxu0 0.0
  %1043 = vmatprep.subr.mxu0 0.0
  %1044 = vmatpush1.msra.mxu0 0.0
  %1045 = vmatprep.subr.mxu0 0.0
  %1046 = vmatpush1.msra.mxu0 0.0
  %1047 = vmatprep.subr.mxu0 0.0
  %1048 = vmatpush1.msra.mxu0 0.0
  %1049 = vmatprep.subr.mxu0 0.0
  %1050 = vmatpush1.msra.mxu0 0.0
  %1051 = vmatprep.subr.mxu0 0.0
  %1052 = vmatpush1.msra.mxu0 0.0
  %1053 = vmatprep.subr.mxu0 0.0
  %1054 = vmatpush1.msra.mxu0 0.0
  %1055 = vmatprep.subr.mxu0 0.0
  %1056 = vmatpush1.msra.mxu0 0.0
  %1057 = vmatprep.subr.mxu0 0.0
  %1058 = vmatpush1.msra.mxu0 0.0
  %1059 = vmatprep.subr.mxu0 0.0
  %1060 = vmatpush1.msra.mxu0 0.0
  %1061 = vmatprep.subr.mxu0 0.0
  %1062 = vmatpush1.msra.mxu0 0.0
  %1063 = vmatprep.subr.mxu0 0.0
  %1064 = vmatpush1.msra.mxu0 0.0
  %1065 = vmatprep.subr.mxu0 0.0
  %1066 = vmatpush1.msra.mxu0 0.0
  %1067 = vmatprep.subr.mxu0 0.0
  %1068 = vmatpush1.msra.mxu0 0.0
  %1069 = vmatprep.subr.mxu0 0.0
  %1070 = vmatpush1.msra.mxu0 0.0
  %1071 = vmatprep.subr.mxu0 0.0
  %1072 = vmatpush1.msra.mxu0 0.0
  %1073 = vmatprep.subr.mxu0 0.0
  %1074 = vmatpush1.msra.mxu0 0.0
  %1075 = vmatprep.subr.mxu0 0.0
  %1076 = vmatpush1.msra.mxu0 0.0
  %1077 = vmatprep.mubr.f32.mxu0 0.0
  %1078 = vmatmul.mubr.f32.gmra.mrb[0].mxu0 %v1011
  %v1079 = vpop.f32.mrb[0].mxu0
  %v1080 = vadd.f32 0.0, %v1079
  %v1081 = vpop.f32.mrb[0].mxu0
  %v1082 = vadd.f32 0.0, %v1081
  %1083 = vdwg.mxu0
  %v1086 = vcombine.low %v1080, %v1082
  %v1088 = vadd.f32 %v992, %v1086
  %v1089 = vxor.u32 %v1088, 2147483648
  %v1090 = vmul.f32 %v1089, 1.442695
  %v1091 = vpow.pop %v1090
  %v1092 = vadd.f32 %v1091, 1.0
  %v1093 = vrcp.pop %v1092
  %v1094 = vmul.f32 1.0, %v1093
  %v1096 = vrot.slane %v1088, 4
  %v1098 = vtanh.pop %v1096
  %v1099 = vld [vmem:[#allocation3] sm:$0xf]
  %1101 = vrot.lane.b32.xlu0 %v1099, 64
  %v1102 = vpop.permute.xlu0 %1101
  %v1104 = vmul.f32 %v1094, %v1102
  %v1105 = vmul.f32 %v1094, %v1098
  %1107 = vrot.lane.b32.xlu0 %v1105, 64
  %v1108 = vpop.permute.xlu0 %1107
  %v1110 = vadd.f32 %v1104, %v1108
  %v1111 = vtanh.pop %v1110
  %1113 = vrot.lane.b32.xlu0 %v1094, 64
  %v1114 = vpop.permute.xlu0 %1113
  %v1115 = vrot.slane %v1114, 4
  %1118 = vrot.lane.b32.xlu0 %v1111, 64
  %v1119 = vpop.permute.xlu0 %1118
  %v1121 = vmul.f32 %v1115, %v1119
  %1123 = vrot.lane.b32.xlu0 %v1110, 64
  %v1124 = vpop.permute.xlu0 %1123
  %1126 = vst.msk [vmem:[#allocation3] sm:$0xf] %vm153, %v1124
  %1127 = vst.msk [vmem:[#allocation2] sm:$0xf] %vm153, %v1121
  %s1128 = scalar_lea.vmem %s2, 28
  %1129 = vst.msk [vmem:[%s1128] sm:$0xf] %vm153, %v1121
  // Predicated region
  $region14: #{lstm_block_forward.6} parent=0 // pred_check
    _
  $region15: #{lstm_block_forward.6} parent=0 // pred_check_branch
    %1131 = sbr.rel (0) target = $region17
  $region16: #{lstm_block_forward.6} parent=0 // pred_region
    _
  $region17: #{lstm_block_forward.6} parent=0 // pred_fallthru
    _
  // Predicated region
  $region18: #{lstm_block_forward.6} parent=0 // pred_check
    _
  $region19: #{lstm_block_forward.6} parent=0 // pred_check_branch
    %1133 = sbr.rel (0) target = $region21
  $region20: #{lstm_block_forward.6} parent=0 // pred_region
    _
  $region21: #{lstm_block_forward.6} parent=0 // pred_fallthru
    _

</llo_original>
